<compile_context>
chip_gen: v5e
topology: v5e:2x2
jax: 0.10.0
libtpu: 0.0.40
codegen_flags: <defaults>
</compile_context>

<pallas_src>
import functools

import jax
import jax.numpy as jnp
from jax.experimental import pallas as pl
from jax.experimental.pallas import tpu as pltpu


def _resblock_kernel(xw_ref, w1_ref, s1_ref, b1_ref, w2_ref, s2_ref, b2_ref,
                     o_ref, *, H, W, C, cdt):
    """One image per grid step.

    xw_ref : (1, C, M)   width-padded input, M = H*(W+2); channels on sublanes,
                         flat pixel index on lanes; pad columns are zero.
    w*_ref : (C, 9*C)    conv weights packed as (Cout, (ky,kx,Cin))   [compute dtype]
    s*_ref : (C, 1)      folded BN scale  = gamma / sqrt(var + eps)   [f32]
    b*_ref : (C, 1)      folded BN bias   = (conv_b - mean)*scale + beta
    o_ref  : (1, C, M)   output in the same flat layout (pad columns zeroed)
    """
    Wp = W + 2
    M = H * Wp
    f32 = jnp.float32

    xw = xw_ref[0]                                        # (C, M) f32

    # valid[r] == True iff flat column r = y*Wp + x' is a real pixel (x' < W).
    col = jax.lax.broadcasted_iota(jnp.int32, (1, M), 1)
    valid = (col % Wp) < W

    # tap offsets in the flat, fully padded pixel axis
    offs = tuple(ky * Wp + kx for ky in range(3) for kx in range(3))

    def conv3x3(act, w_ref):
        """act: (C, M) with zeros in the pad columns -> (C, M) f32 conv output."""
        a = act.astype(cdt)
        z = jnp.zeros((C, Wp + 1), cdt)
        # Flat padded pixel axis: column f <-> padded pixel (f // Wp, f % Wp);
        # [top pad row + left pad][interior rows incl. their R/L pads][bottom pad].
        fpad = jnp.concatenate([z, a, z], axis=1)         # (C, M + 2*(Wp+1))
        # im2col built entirely in-register (lane shifts), no VMEM round trip.
        taps = [fpad[:, o:o + M] for o in offs]           # 9 x (C, M)
        pt = jnp.concatenate(taps, axis=0)                # (9C, M)
        # single MXU matmul per conv: K = 9C, f32 accumulation.
        return jnp.dot(w_ref[...], pt, preferred_element_type=f32)   # (C, M)

    # conv1 -> BN1 -> ReLU   (BN + conv bias folded into scale/bias)
    h1 = jnp.maximum(conv3x3(xw, w1_ref) * s1_ref[...] + b1_ref[...], 0.0)
    h1 = jnp.where(valid, h1, 0.0)     # pad columns must be zero: they are conv2's padding

    # conv2 -> BN2 -> ReLU
    h2 = jnp.maximum(conv3x3(h1, w2_ref) * s2_ref[...] + b2_ref[...], 0.0)

    # identity residual (exact f32 x) + final ReLU
    out = jnp.maximum(h2 + xw, 0.0)
    o_ref[0] = jnp.where(valid, out, 0.0).astype(o_ref.dtype)


def residual_block_pallas(x_nchw, w1, b1, bn1, w2, b2, bn2, *,
                          eps=1e-5, compute_dtype=jnp.float32):
    """x_nchw: (N, C, H, W). w*: (3,3,C,C) HWIO. b*: (C,). bn* = (gamma, beta, mean, var).

    compute_dtype=jnp.bfloat16 is recommended on v6e/v7x (MXU native rate,
    f32 accumulation); jnp.float32 matches the PyTorch module bit-faithfully.
    """
    N, C, H, W = x_nchw.shape
    Wp = W + 2
    M = H * Wp

    # Ship the input ONCE: width-pad by 2 columns and flatten (H, Wp) -> M so the
    # kernel sees (C, M).  Height padding is done in-kernel (free zero concat).
    xw = jnp.pad(x_nchw.astype(jnp.float32), ((0, 0), (0, 0), (0, 0), (0, 2)))
    xw = xw.reshape(N, C, M)

    def fold_bn(conv_bias, bn):
        gamma, beta, mean, var = bn
        scale = gamma / jnp.sqrt(var + eps)
        bias = (conv_bias - mean) * scale + beta
        return (scale.reshape(C, 1).astype(jnp.float32),
                bias.reshape(C, 1).astype(jnp.float32))

    s1, bb1 = fold_bn(b1, bn1)
    s2, bb2 = fold_bn(b2, bn2)

    # HWIO (3,3,Cin,Cout) -> (Cout, 9*Cin), tap-major then input channel.
    def pack_w(w):
        return jnp.transpose(w, (3, 0, 1, 2)).reshape(C, 9 * C).astype(compute_dtype)

    w1m, w2m = pack_w(w1), pack_w(w2)

    kernel = functools.partial(_resblock_kernel, H=H, W=W, C=C, cdt=compute_dtype)
    rep = lambda n: (0, 0)

    outp = pl.pallas_call(
        kernel,
        out_shape=jax.ShapeDtypeStruct((N, C, M), jnp.float32),
        grid_spec=pltpu.PrefetchScalarGridSpec(
            num_scalar_prefetch=0,
            grid=(N,),
            in_specs=[
                pl.BlockSpec((1, C, M), lambda n: (n, 0, 0)),   # width-padded x
                pl.BlockSpec((C, 9 * C), rep),                  # w1 (im2col-packed)
                pl.BlockSpec((C, 1), rep),                      # scale1
                pl.BlockSpec((C, 1), rep),                      # bias1
                pl.BlockSpec((C, 9 * C), rep),                  # w2
                pl.BlockSpec((C, 1), rep),                      # scale2
                pl.BlockSpec((C, 1), rep),                      # bias2
            ],
            out_specs=pl.BlockSpec((1, C, M), lambda n: (n, 0, 0)),
        ),
        compiler_params=pltpu.CompilerParams(
            dimension_semantics=("parallel",)),
    )(xw, w1m, s1, bb1, w2m, s2, bb2)

    # Drop the 2 overcompute columns per image row: (N, C, H*Wp) -> (N, C, H, W).
    return outp.reshape(N, C, H, Wp)[:, :, :, :W]


def _reference(x_nchw, w1, b1, bn1, w2, b2, bn2, eps=1e-5,
               compute_dtype=jnp.float32):
    """Pure-JAX reference matching the PyTorch module; optional bf16 matmul operands."""
    x = jnp.transpose(x_nchw, (0, 2, 3, 1)).astype(jnp.float32)   # NHWC

    def conv_bn_relu(h, w, b, bn):
        gamma, beta, mean, var = bn
        y = jax.lax.conv_general_dilated(
            h.astype(compute_dtype), w.astype(compute_dtype),
            window_strides=(1, 1), padding=((1, 1), (1, 1)),
            dimension_numbers=("NHWC", "HWIO", "NHWC"),
            preferred_element_type=jnp.float32) + b
        y = (y - mean) / jnp.sqrt(var + eps) * gamma + beta
        return jnp.maximum(y, 0.0)

    out = conv_bn_relu(x, w1, b1, bn1)
    out = conv_bn_relu(out, w2, b2, bn2)
    out = jnp.maximum(out + x, 0.0)
    return jnp.transpose(out, (0, 3, 1, 2))


if __name__ == "__main__":
    N, C, H, W = 2, 32, 16, 16   # in_channels == out_channels, stride=1, no downsample

    key = jax.random.PRNGKey(0)
    ks = jax.random.split(key, 13)
    x = jax.random.normal(ks[0], (N, C, H, W), jnp.float32)

    # Conv weights in HWIO layout (kh, kw, Cin, Cout); deterministic init.
    w1 = jax.random.normal(ks[1], (3, 3, C, C), jnp.float32) * 0.1
    b1 = jax.random.normal(ks[2], (C,), jnp.float32) * 0.1
    w2 = jax.random.normal(ks[3], (3, 3, C, C), jnp.float32) * 0.1
    b2 = jax.random.normal(ks[4], (C,), jnp.float32) * 0.1

    # BatchNorm (eval-mode) params: gamma, beta, running_mean, running_var.
    bn1 = (jax.random.uniform(ks[5], (C,), jnp.float32, 0.5, 1.5),
           jax.random.normal(ks[6], (C,), jnp.float32) * 0.1,
           jax.random.normal(ks[7], (C,), jnp.float32) * 0.1,
           jax.random.uniform(ks[8], (C,), jnp.float32, 0.5, 1.5))
    bn2 = (jax.random.uniform(ks[9], (C,), jnp.float32, 0.5, 1.5),
           jax.random.normal(ks[10], (C,), jnp.float32) * 0.1,
           jax.random.normal(ks[11], (C,), jnp.float32) * 0.1,
           jax.random.uniform(ks[12], (C,), jnp.float32, 0.5, 1.5))

    # 1) f32 compute path: faithful to the module, tight check.
    out_f32 = jax.block_until_ready(
        residual_block_pallas(x, w1, b1, bn1, w2, b2, bn2,
                              compute_dtype=jnp.float32))
    ref_f32 = jax.block_until_ready(_reference(x, w1, b1, bn1, w2, b2, bn2))
    assert out_f32.shape == (N, C, H, W)
    err = float(jnp.max(jnp.abs(out_f32 - ref_f32)))
    assert err < 1e-3, err

    # 2) bf16-operand path (v6e/v7x recommendation): check against a reference
    #    that applies the same operand cast (accumulation stays f32 in both).
    out_bf = jax.block_until_ready(
        residual_block_pallas(x, w1, b1, bn1, w2, b2, bn2,
                              compute_dtype=jnp.bfloat16))
    ref_bf = jax.block_until_ready(
        _reference(x, w1, b1, bn1, w2, b2, bn2, compute_dtype=jnp.bfloat16))
    err_bf = float(jnp.max(jnp.abs(out_bf - ref_bf)))
    assert err_bf < 5e-2, err_bf

    print("KERNEL_OK")
</pallas_src>

<mosaic_0001>
module attributes {stable_mosaic.version = 11 : i64} {
  func.func @_resblock_kernel(%arg0: i32, %arg1: memref<1x32x288xf32, #tpu.memory_space<vmem>>, %arg2: memref<32x288xf32, #tpu.memory_space<vmem>>, %arg3: memref<32x1xf32, #tpu.memory_space<vmem>>, %arg4: memref<32x1xf32, #tpu.memory_space<vmem>>, %arg5: memref<32x288xf32, #tpu.memory_space<vmem>>, %arg6: memref<32x1xf32, #tpu.memory_space<vmem>>, %arg7: memref<32x1xf32, #tpu.memory_space<vmem>>, %arg8: memref<1x32x288xf32, #tpu.memory_space<vmem>>) attributes {dimension_semantics = [#tpu.dimension_semantics<parallel>], iteration_bounds = array<i64: 2>, scalar_prefetch = 0 : i64, scratch_operands = 0 : i64, tpu.core_type = #tpu.core_type<tc>, window_params = [{transform_indices = @transform_0, window_bounds = array<i64: 1, 32, 288>}, {pipeline_mode = #tpu.pipeline_mode<synchronous>, transform_indices = @transform_1, window_bounds = array<i64: 32, 288>}, {pipeline_mode = #tpu.pipeline_mode<synchronous>, transform_indices = @transform_2, window_bounds = array<i64: 32, 1>}, {pipeline_mode = #tpu.pipeline_mode<synchronous>, transform_indices = @transform_3, window_bounds = array<i64: 32, 1>}, {pipeline_mode = #tpu.pipeline_mode<synchronous>, transform_indices = @transform_4, window_bounds = array<i64: 32, 288>}, {pipeline_mode = #tpu.pipeline_mode<synchronous>, transform_indices = @transform_5, window_bounds = array<i64: 32, 1>}, {pipeline_mode = #tpu.pipeline_mode<synchronous>, transform_indices = @transform_6, window_bounds = array<i64: 32, 1>}, {transform_indices = @transform_7, window_bounds = array<i64: 1, 32, 288>}]} {
    %c0 = arith.constant 0 : index
    %c0_0 = arith.constant 0 : index
    %c0_1 = arith.constant 0 : index
    %0 = vector.load %arg1[%c0, %c0_0, %c0_1] : memref<1x32x288xf32, #tpu.memory_space<vmem>>, vector<1x32x288xf32>
    %1 = vector.shape_cast %0 : vector<1x32x288xf32> to vector<32x288xf32>
    %2 = tpu.iota {dimensions = array<i32: 1>} : vector<1x288xi32>
    %c18_i32 = arith.constant 18 : i32
    %c0_i32 = arith.constant 0 : i32
    %3 = arith.cmpi eq, %c18_i32, %c0_i32 : i32
    %c1_i32 = arith.constant 1 : i32
    %4 = arith.select %3, %c1_i32, %c18_i32 : i32
    %5 = vector.broadcast %4 : i32 to vector<1x288xi32>
    %6 = arith.remsi %2, %5 : vector<1x288xi32>
    %c0_i32_2 = arith.constant 0 : i32
    %7 = vector.broadcast %c0_i32_2 : i32 to vector<1x288xi32>
    %8 = arith.cmpi ne, %6, %7 : vector<1x288xi32>
    %c0_i32_3 = arith.constant 0 : i32
    %9 = vector.broadcast %c0_i32_3 : i32 to vector<1x288xi32>
    %10 = arith.cmpi slt, %6, %9 : vector<1x288xi32>
    %c0_i32_4 = arith.constant 0 : i32
    %11 = arith.cmpi slt, %4, %c0_i32_4 : i32
    %12 = vector.broadcast %11 : i1 to vector<1x288xi1>
    %13 = vector.broadcast %12 : vector<1x288xi1> to vector<1x288xi1>
    %14 = arith.xori %10, %13 : vector<1x288xi1>
    %15 = arith.andi %14, %8 : vector<1x288xi1>
    %16 = vector.broadcast %4 : i32 to vector<1x288xi32>
    %17 = arith.addi %6, %16 : vector<1x288xi32>
    %18 = arith.select %15, %17, %6 : vector<1x288xi1>, vector<1x288xi32>
    %c16_i32 = arith.constant 16 : i32
    %19 = vector.broadcast %c16_i32 : i32 to vector<1x288xi32>
    %20 = arith.cmpi slt, %18, %19 : vector<1x288xi32>
    %cst = arith.constant 0.000000e+00 : f32
    %21 = vector.broadcast %cst : f32 to vector<32x19xf32>
    %22 = tpu.concatenate %21, %1, %21 in 1 : vector<32x19xf32>, vector<32x288xf32>, vector<32x19xf32> -> vector<32x326xf32>
    %23 = vector.extract_strided_slice %22 {offsets = [0, 0], sizes = [32, 288], strides = [1, 1]} : vector<32x326xf32> to vector<32x288xf32>
    %24 = vector.extract_strided_slice %22 {offsets = [0, 1], sizes = [32, 288], strides = [1, 1]} : vector<32x326xf32> to vector<32x288xf32>
    %25 = vector.extract_strided_slice %22 {offsets = [0, 2], sizes = [32, 288], strides = [1, 1]} : vector<32x326xf32> to vector<32x288xf32>
    %26 = vector.extract_strided_slice %22 {offsets = [0, 18], sizes = [32, 288], strides = [1, 1]} : vector<32x326xf32> to vector<32x288xf32>
    %27 = vector.extract_strided_slice %22 {offsets = [0, 19], sizes = [32, 288], strides = [1, 1]} : vector<32x326xf32> to vector<32x288xf32>
    %28 = vector.extract_strided_slice %22 {offsets = [0, 20], sizes = [32, 288], strides = [1, 1]} : vector<32x326xf32> to vector<32x288xf32>
    %29 = vector.extract_strided_slice %22 {offsets = [0, 36], sizes = [32, 288], strides = [1, 1]} : vector<32x326xf32> to vector<32x288xf32>
    %30 = vector.extract_strided_slice %22 {offsets = [0, 37], sizes = [32, 288], strides = [1, 1]} : vector<32x326xf32> to vector<32x288xf32>
    %31 = vector.extract_strided_slice %22 {offsets = [0, 38], sizes = [32, 288], strides = [1, 1]} : vector<32x326xf32> to vector<32x288xf32>
    %32 = tpu.concatenate %23, %24, %25, %26, %27, %28, %29, %30, %31 in 0 : vector<32x288xf32>, vector<32x288xf32>, vector<32x288xf32>, vector<32x288xf32>, vector<32x288xf32>, vector<32x288xf32>, vector<32x288xf32>, vector<32x288xf32>, vector<32x288xf32> -> vector<288x288xf32>
    %c0_5 = arith.constant 0 : index
    %c0_6 = arith.constant 0 : index
    %33 = vector.load %arg2[%c0_5, %c0_6] : memref<32x288xf32, #tpu.memory_space<vmem>>, vector<32x288xf32>
    %cst_7 = arith.constant dense<0.000000e+00> : vector<32x288xf32>
    %34 = tpu.matmul %33, %32, %cst_7 {dimension_numbers = #tpu.dot_dimension_numbers<[1], [0], [0], [1], [0, 0, 1, 1], [], []>} : vector<32x288xf32>, vector<288x288xf32>, vector<32x288xf32> -> vector<32x288xf32>
    %c0_8 = arith.constant 0 : index
    %c0_9 = arith.constant 0 : index
    %35 = vector.load %arg3[%c0_8, %c0_9] : memref<32x1xf32, #tpu.memory_space<vmem>>, vector<32x1xf32>
    %36 = vector.broadcast %35 : vector<32x1xf32> to vector<32x288xf32>
    %37 = arith.mulf %34, %36 : vector<32x288xf32>
    %c0_10 = arith.constant 0 : index
    %c0_11 = arith.constant 0 : index
    %38 = vector.load %arg4[%c0_10, %c0_11] : memref<32x1xf32, #tpu.memory_space<vmem>>, vector<32x1xf32>
    %39 = vector.broadcast %38 : vector<32x1xf32> to vector<32x288xf32>
    %40 = arith.addf %37, %39 : vector<32x288xf32>
    %cst_12 = arith.constant 0.000000e+00 : f32
    %41 = vector.broadcast %cst_12 : f32 to vector<32x288xf32>
    %42 = arith.maximumf %40, %41 : vector<32x288xf32>
    %cst_13 = arith.constant 0.000000e+00 : f32
    %43 = vector.shape_cast %20 : vector<1x288xi1> to vector<1x288xi1>
    %44 = vector.broadcast %43 : vector<1x288xi1> to vector<32x288xi1>
    %45 = vector.broadcast %cst_13 : f32 to vector<32x288xf32>
    %46 = arith.select %44, %42, %45 : vector<32x288xi1>, vector<32x288xf32>
    %cst_14 = arith.constant 0.000000e+00 : f32
    %47 = vector.broadcast %cst_14 : f32 to vector<32x19xf32>
    %48 = tpu.concatenate %47, %46, %47 in 1 : vector<32x19xf32>, vector<32x288xf32>, vector<32x19xf32> -> vector<32x326xf32>
    %49 = vector.extract_strided_slice %48 {offsets = [0, 0], sizes = [32, 288], strides = [1, 1]} : vector<32x326xf32> to vector<32x288xf32>
    %50 = vector.extract_strided_slice %48 {offsets = [0, 1], sizes = [32, 288], strides = [1, 1]} : vector<32x326xf32> to vector<32x288xf32>
    %51 = vector.extract_strided_slice %48 {offsets = [0, 2], sizes = [32, 288], strides = [1, 1]} : vector<32x326xf32> to vector<32x288xf32>
    %52 = vector.extract_strided_slice %48 {offsets = [0, 18], sizes = [32, 288], strides = [1, 1]} : vector<32x326xf32> to vector<32x288xf32>
    %53 = vector.extract_strided_slice %48 {offsets = [0, 19], sizes = [32, 288], strides = [1, 1]} : vector<32x326xf32> to vector<32x288xf32>
    %54 = vector.extract_strided_slice %48 {offsets = [0, 20], sizes = [32, 288], strides = [1, 1]} : vector<32x326xf32> to vector<32x288xf32>
    %55 = vector.extract_strided_slice %48 {offsets = [0, 36], sizes = [32, 288], strides = [1, 1]} : vector<32x326xf32> to vector<32x288xf32>
    %56 = vector.extract_strided_slice %48 {offsets = [0, 37], sizes = [32, 288], strides = [1, 1]} : vector<32x326xf32> to vector<32x288xf32>
    %57 = vector.extract_strided_slice %48 {offsets = [0, 38], sizes = [32, 288], strides = [1, 1]} : vector<32x326xf32> to vector<32x288xf32>
    %58 = tpu.concatenate %49, %50, %51, %52, %53, %54, %55, %56, %57 in 0 : vector<32x288xf32>, vector<32x288xf32>, vector<32x288xf32>, vector<32x288xf32>, vector<32x288xf32>, vector<32x288xf32>, vector<32x288xf32>, vector<32x288xf32>, vector<32x288xf32> -> vector<288x288xf32>
    %c0_15 = arith.constant 0 : index
    %c0_16 = arith.constant 0 : index
    %59 = vector.load %arg5[%c0_15, %c0_16] : memref<32x288xf32, #tpu.memory_space<vmem>>, vector<32x288xf32>
    %cst_17 = arith.constant dense<0.000000e+00> : vector<32x288xf32>
    %60 = tpu.matmul %59, %58, %cst_17 {dimension_numbers = #tpu.dot_dimension_numbers<[1], [0], [0], [1], [0, 0, 1, 1], [], []>} : vector<32x288xf32>, vector<288x288xf32>, vector<32x288xf32> -> vector<32x288xf32>
    %c0_18 = arith.constant 0 : index
    %c0_19 = arith.constant 0 : index
    %61 = vector.load %arg6[%c0_18, %c0_19] : memref<32x1xf32, #tpu.memory_space<vmem>>, vector<32x1xf32>
    %62 = vector.broadcast %61 : vector<32x1xf32> to vector<32x288xf32>
    %63 = arith.mulf %60, %62 : vector<32x288xf32>
    %c0_20 = arith.constant 0 : index
    %c0_21 = arith.constant 0 : index
    %64 = vector.load %arg7[%c0_20, %c0_21] : memref<32x1xf32, #tpu.memory_space<vmem>>, vector<32x1xf32>
    %65 = vector.broadcast %64 : vector<32x1xf32> to vector<32x288xf32>
    %66 = arith.addf %63, %65 : vector<32x288xf32>
    %cst_22 = arith.constant 0.000000e+00 : f32
    %67 = vector.broadcast %cst_22 : f32 to vector<32x288xf32>
    %68 = arith.maximumf %66, %67 : vector<32x288xf32>
    %69 = arith.addf %68, %1 : vector<32x288xf32>
    %cst_23 = arith.constant 0.000000e+00 : f32
    %70 = vector.broadcast %cst_23 : f32 to vector<32x288xf32>
    %71 = arith.maximumf %69, %70 : vector<32x288xf32>
    %cst_24 = arith.constant 0.000000e+00 : f32
    %72 = vector.shape_cast %20 : vector<1x288xi1> to vector<1x288xi1>
    %73 = vector.broadcast %72 : vector<1x288xi1> to vector<32x288xi1>
    %74 = vector.broadcast %cst_24 : f32 to vector<32x288xf32>
    %75 = arith.select %73, %71, %74 : vector<32x288xi1>, vector<32x288xf32>
    %c0_25 = arith.constant 0 : index
    %c0_26 = arith.constant 0 : index
    %c0_27 = arith.constant 0 : index
    %76 = vector.load %arg8[%c0_25, %c0_26, %c0_27] : memref<1x32x288xf32, #tpu.memory_space<vmem>>, vector<1x32x288xf32>
    %77 = vector.shape_cast %76 : vector<1x32x288xf32> to vector<32x288xf32>
    %78 = vector.shape_cast %75 : vector<32x288xf32> to vector<1x32x288xf32>
    tpu.vector_store %arg8[%c0_25, %c0_26, %c0_27], %78 {strides = array<i32>} : memref<1x32x288xf32, #tpu.memory_space<vmem>>, vector<1x32x288xf32>,
    return
  }
  func.func @transform_0(%arg0: i32) -> (i32, i32, i32) {
    %c0_i32 = arith.constant 0 : i32
    %c0_i32_0 = arith.constant 0 : i32
    %c0_i32_1 = arith.constant 0 : i32
    return %arg0, %c0_i32, %c0_i32_0 : i32, i32, i32
  }
  func.func @transform_1(%arg0: i32) -> (i32, i32) {
    %c0_i32 = arith.constant 0 : i32
    %c0_i32_0 = arith.constant 0 : i32
    %c0_i32_1 = arith.constant 0 : i32
    return %c0_i32, %c0_i32_0 : i32, i32
  }
  func.func @transform_2(%arg0: i32) -> (i32, i32) {
    %c0_i32 = arith.constant 0 : i32
    %c0_i32_0 = arith.constant 0 : i32
    %c0_i32_1 = arith.constant 0 : i32
    return %c0_i32, %c0_i32_0 : i32, i32
  }
  func.func @transform_3(%arg0: i32) -> (i32, i32) {
    %c0_i32 = arith.constant 0 : i32
    %c0_i32_0 = arith.constant 0 : i32
    %c0_i32_1 = arith.constant 0 : i32
    return %c0_i32, %c0_i32_0 : i32, i32
  }
  func.func @transform_4(%arg0: i32) -> (i32, i32) {
    %c0_i32 = arith.constant 0 : i32
    %c0_i32_0 = arith.constant 0 : i32
    %c0_i32_1 = arith.constant 0 : i32
    return %c0_i32, %c0_i32_0 : i32, i32
  }
  func.func @transform_5(%arg0: i32) -> (i32, i32) {
    %c0_i32 = arith.constant 0 : i32
    %c0_i32_0 = arith.constant 0 : i32
    %c0_i32_1 = arith.constant 0 : i32
    return %c0_i32, %c0_i32_0 : i32, i32
  }
  func.func @transform_6(%arg0: i32) -> (i32, i32) {
    %c0_i32 = arith.constant 0 : i32
    %c0_i32_0 = arith.constant 0 : i32
    %c0_i32_1 = arith.constant 0 : i32
    return %c0_i32, %c0_i32_0 : i32, i32
  }
  func.func @transform_7(%arg0: i32) -> (i32, i32, i32) {
    %c0_i32 = arith.constant 0 : i32
    %c0_i32_0 = arith.constant 0 : i32
    %c0_i32_1 = arith.constant 0 : i32
    return %arg0, %c0_i32, %c0_i32_0 : i32, i32, i32
  }
}

</mosaic_0001>

<llo_original>
// kernel: tpu_custom_call.1
$region0: #{tpu_custom_call.1}
  #allocation0 [shape = 'u32[]', space=smem, size = 0x4, offset = 0x4, fixed_abs, tag = 'smem constant byte address 0x4 - core index']
  #allocation1 [shape = 'u32[72,128]{1,0:T(1,128)}', space=vmem, size = 0x9000, scoped, tag = 'internal scratch']
  %s0 = inlined_call_operand.hbm [shape: f32[2,32,288], index: 0, kind: input, shape index: {}]
  %s1 = inlined_call_operand.hbm [shape: f32[32,288], index: 1, kind: input, shape index: {}]
  %s2 = inlined_call_operand.vmem [shape: f32[32,1], index: 2, kind: input, shape index: {}]
  %s3 = inlined_call_operand.vmem [shape: f32[32,1], index: 3, kind: input, shape index: {}]
  %s4 = inlined_call_operand.hbm [shape: f32[32,288], index: 4, kind: input, shape index: {}]
  %s5 = inlined_call_operand.vmem [shape: f32[32,1], index: 5, kind: input, shape index: {}]
  %s6 = inlined_call_operand.vmem [shape: f32[32,1], index: 6, kind: input, shape index: {}]
  %s7 = inlined_call_operand.hbm [shape: f32[2,32,288], index: 7, kind: output, shape index: {}]
  %s8 = sld [smem:[#allocation0]]
  $region73: #{tpu_custom_call.1} parent=0
    _
  %s10 = ssub.s32 1, %s8
  %s11 = scalar_select 0, %s10, %s8
  $region1: #{tpu_custom_call.1} parent=0
    #allocation2 [shape = 'u8[98304]{0}', space=vmem, size = 0x18000, scoped, tag = 'input window, operand 0']
    #allocation3 [shape = 's32[2]{0}', space=sflag, size = 0x8, scoped, tag = 'scoped memory for tpu_custom_call.1']
    #allocation4 [shape = 's32[2]{0}', space=sflag, size = 0x8, scoped, tag = 'scoped memory for tpu_custom_call.1']
    #allocation5 [shape = 'u8[49152]{0}', space=vmem, size = 0xc000, scoped, tag = 'input window, operand 1, single buffered']
    #allocation6 [shape = 's32[1]{0}', space=sflag, size = 0x4, scoped, tag = 'scoped memory for tpu_custom_call.1']
    #allocation7 [shape = 'u8[49152]{0}', space=vmem, size = 0xc000, scoped, tag = 'input window, operand 4, single buffered']
    #allocation8 [shape = 'u8[98304]{0}', space=vmem, size = 0x18000, scoped, tag = 'output window, operand 0']
    %12 = vsyncpa [#allocation3], 0
    %s13 = scalar_lea.sflag [#allocation3], 1
    %14 = vsyncpa %s13, 0
    %15 = vsyncpa [#allocation6], 0
    %16 = vsyncpa [#allocation4], 0
    %s17 = scalar_lea.sflag [#allocation4], 1
    %18 = vsyncpa %s17, 0
    loop: start=0, step=1, limit=4
    $region2: #{tpu_custom_call.1} parent=1 // loop_pre_header
      _
    $region3: #{tpu_custom_call.1} parent=1 // loop_header
      %s20 = sphi 0, %s24
      %p21 = scmp.ge.s32.totalorder %s20, 4
      %s30 = sphi 0, %s32
      %s33 = sphi 0, %s30
      %s34 = sphi 0, %s33
      %s50 = sphi 0, %s34
      %s54 = sphi 0, %s54
      %s56 = sphi 0, %s54
      %s57 = sphi 0, %s56
      %s71 = sphi 0, %s57
      %s75 = sphi 0, %s75
      %s77 = sphi 0, %s75
      %s78 = sphi 0, %s77
      %s92 = sphi 0, %s78
      %s96 = sphi 0, %s96
      %s98 = sphi 0, %s96
      %s99 = sphi 0, %s98
      %s113 = sphi 0, %s99
      %s117 = sphi 0, %s117
      %s119 = sphi 0, %s117
      %s120 = sphi 0, %s119
      %s134 = sphi 0, %s120
      %s138 = sphi 0, %s138
      %s140 = sphi 0, %s138
      %s141 = sphi 0, %s140
      %s155 = sphi 0, %s141
      %s159 = sphi 0, %s159
      %s161 = sphi 0, %s159
      %s162 = sphi 0, %s161
      %s176 = sphi 0, %s162
      %s182 = sphi 0, %s184
      %s185 = sphi 0, %s182
      %s186 = sphi 0, %s185
      %s202 = sphi 0, %s186
    $region4: #{tpu_custom_call.1} parent=1 // loop_header_branch
      %23 = sbr.rel (%p21) target = $region8
    $region5: #{tpu_custom_call.1} parent=1 // loop_body
      %s25 = ssub.s32 %s20, 1
      %s26 = ssub.s32 %s20, 2
      %s27 = sadd.s32 %s20, 1
      %s28 = ssub.s32 %s20, %s27
      %p29 = scmp.eq.s32.totalorder %s28, 0
      %s31 = sadd.s32 %s30, 1
      %s32 = scalar_select %p29, %s30, %s31
      %p35 = pneg %p29
      %p36 = scmp.eq.s32.totalorder %s20, 1
      %p37 = por %p35, %p36
      %p38 = scmp.ne.s32.totalorder %s30, %s33
      %p39 = scmp.eq.s32.totalorder %s20, 0
      %p40 = por %p38, %p39
      %p41 = scmp.ne.s32.totalorder %s30, %s33
      %p42 = scmp.eq.s32.totalorder %s25, 1
      %p43 = por %p41, %p42
      %p44 = scmp.ne.s32.totalorder %s33, %s34
      %p45 = scmp.eq.s32.totalorder %s25, 0
      %p46 = por %p44, %p45
      %p47 = scmp.ne.s32.totalorder %s33, %s34
      %p48 = scmp.eq.s32.totalorder %s26, 1
      %p49 = por %p47, %p48
      %p51 = scmp.ne.s32.totalorder %s34, %s50
      %p52 = scmp.eq.s32.totalorder %s26, 0
      %p53 = por %p51, %p52
      %s55 = sadd.s32 %s54, 1
      %p58 = scmp.eq.s32.totalorder %s20, 1
      %p59 = scmp.ne.s32.totalorder %s54, %s56
      %p60 = scmp.eq.s32.totalorder %s20, 0
      %p61 = por %p59, %p60
      %p62 = scmp.ne.s32.totalorder %s54, %s56
      %p63 = scmp.eq.s32.totalorder %s25, 1
      %p64 = por %p62, %p63
      %p65 = scmp.ne.s32.totalorder %s56, %s57
      %p66 = scmp.eq.s32.totalorder %s25, 0
      %p67 = por %p65, %p66
      %p68 = scmp.ne.s32.totalorder %s56, %s57
      %p69 = scmp.eq.s32.totalorder %s26, 1
      %p70 = por %p68, %p69
      %p72 = scmp.ne.s32.totalorder %s57, %s71
      %p73 = scmp.eq.s32.totalorder %s26, 0
      %p74 = por %p72, %p73
      %s76 = sadd.s32 %s75, 1
      %p79 = scmp.eq.s32.totalorder %s20, 1
      %p80 = scmp.ne.s32.totalorder %s75, %s77
      %p81 = scmp.eq.s32.totalorder %s20, 0
      %p82 = por %p80, %p81
      %p83 = scmp.ne.s32.totalorder %s75, %s77
      %p84 = scmp.eq.s32.totalorder %s25, 1
      %p85 = por %p83, %p84
      %p86 = scmp.ne.s32.totalorder %s77, %s78
      %p87 = scmp.eq.s32.totalorder %s25, 0
      %p88 = por %p86, %p87
      %p89 = scmp.ne.s32.totalorder %s77, %s78
      %p90 = scmp.eq.s32.totalorder %s26, 1
      %p91 = por %p89, %p90
      %p93 = scmp.ne.s32.totalorder %s78, %s92
      %p94 = scmp.eq.s32.totalorder %s26, 0
      %p95 = por %p93, %p94
      %s97 = sadd.s32 %s96, 1
      %p100 = scmp.eq.s32.totalorder %s20, 1
      %p101 = scmp.ne.s32.totalorder %s96, %s98
      %p102 = scmp.eq.s32.totalorder %s20, 0
      %p103 = por %p101, %p102
      %p104 = scmp.ne.s32.totalorder %s96, %s98
      %p105 = scmp.eq.s32.totalorder %s25, 1
      %p106 = por %p104, %p105
      %p107 = scmp.ne.s32.totalorder %s98, %s99
      %p108 = scmp.eq.s32.totalorder %s25, 0
      %p109 = por %p107, %p108
      %p110 = scmp.ne.s32.totalorder %s98, %s99
      %p111 = scmp.eq.s32.totalorder %s26, 1
      %p112 = por %p110, %p111
      %p114 = scmp.ne.s32.totalorder %s99, %s113
      %p115 = scmp.eq.s32.totalorder %s26, 0
      %p116 = por %p114, %p115
      %s118 = sadd.s32 %s117, 1
      %p121 = scmp.eq.s32.totalorder %s20, 1
      %p122 = scmp.ne.s32.totalorder %s117, %s119
      %p123 = scmp.eq.s32.totalorder %s20, 0
      %p124 = por %p122, %p123
      %p125 = scmp.ne.s32.totalorder %s117, %s119
      %p126 = scmp.eq.s32.totalorder %s25, 1
      %p127 = por %p125, %p126
      %p128 = scmp.ne.s32.totalorder %s119, %s120
      %p129 = scmp.eq.s32.totalorder %s25, 0
      %p130 = por %p128, %p129
      %p131 = scmp.ne.s32.totalorder %s119, %s120
      %p132 = scmp.eq.s32.totalorder %s26, 1
      %p133 = por %p131, %p132
      %p135 = scmp.ne.s32.totalorder %s120, %s134
      %p136 = scmp.eq.s32.totalorder %s26, 0
      %p137 = por %p135, %p136
      %s139 = sadd.s32 %s138, 1
      %p142 = scmp.eq.s32.totalorder %s20, 1
      %p143 = scmp.ne.s32.totalorder %s138, %s140
      %p144 = scmp.eq.s32.totalorder %s20, 0
      %p145 = por %p143, %p144
      %p146 = scmp.ne.s32.totalorder %s138, %s140
      %p147 = scmp.eq.s32.totalorder %s25, 1
      %p148 = por %p146, %p147
      %p149 = scmp.ne.s32.totalorder %s140, %s141
      %p150 = scmp.eq.s32.totalorder %s25, 0
      %p151 = por %p149, %p150
      %p152 = scmp.ne.s32.totalorder %s140, %s141
      %p153 = scmp.eq.s32.totalorder %s26, 1
      %p154 = por %p152, %p153
      %p156 = scmp.ne.s32.totalorder %s141, %s155
      %p157 = scmp.eq.s32.totalorder %s26, 0
      %p158 = por %p156, %p157
      %s160 = sadd.s32 %s159, 1
      %p163 = scmp.eq.s32.totalorder %s20, 1
      %p164 = scmp.ne.s32.totalorder %s159, %s161
      %p165 = scmp.eq.s32.totalorder %s20, 0
      %p166 = por %p164, %p165
      %p167 = scmp.ne.s32.totalorder %s159, %s161
      %p168 = scmp.eq.s32.totalorder %s25, 1
      %p169 = por %p167, %p168
      %p170 = scmp.ne.s32.totalorder %s161, %s162
      %p171 = scmp.eq.s32.totalorder %s25, 0
      %p172 = por %p170, %p171
      %p173 = scmp.ne.s32.totalorder %s161, %s162
      %p174 = scmp.eq.s32.totalorder %s26, 1
      %p175 = por %p173, %p174
      %p177 = scmp.ne.s32.totalorder %s162, %s176
      %p178 = scmp.eq.s32.totalorder %s26, 0
      %p179 = por %p177, %p178
      %s180 = ssub.s32 %s20, %s27
      %p181 = scmp.eq.s32.totalorder %s180, 0
      %s183 = sadd.s32 %s182, 1
      %s184 = scalar_select %p181, %s182, %s183
      %p187 = pneg %p181
      %p188 = scmp.eq.s32.totalorder %s20, 1
      %p189 = por %p187, %p188
      %p190 = scmp.ne.s32.totalorder %s182, %s185
      %p191 = scmp.eq.s32.totalorder %s20, 0
      %p192 = por %p190, %p191
      %p193 = scmp.ne.s32.totalorder %s182, %s185
      %p194 = scmp.eq.s32.totalorder %s25, 1
      %p195 = por %p193, %p194
      %p196 = scmp.ne.s32.totalorder %s185, %s186
      %p197 = scmp.eq.s32.totalorder %s25, 0
      %p198 = por %p196, %p197
      %p199 = scmp.ne.s32.totalorder %s185, %s186
      %p200 = scmp.eq.s32.totalorder %s26, 1
      %p201 = por %p199, %p200
      %p203 = scmp.ne.s32.totalorder %s186, %s202
      %p204 = scmp.eq.s32.totalorder %s26, 0
      %p205 = por %p203, %p204
      %p206 = scmp.le.s32.totalorder 1, %s20
      %p207 = scmp.lt.s32.totalorder %s20, 3
      %p208 = pnand %p206, %p207
      %p209 = pneg %p208
      // Predicated region
      $region9: #{tpu_custom_call.1} parent=5 // pred_check
        _
      $region10: #{tpu_custom_call.1} parent=5 // pred_check_branch
        %211 = sbr.rel (%p208) target = $region12
      $region11: #{tpu_custom_call.1} parent=5 // pred_region
        %s212 = ssub.s32 %s20, 1
        // Predicated region
        $region13: #{tpu_custom_call.1} parent=11 // pred_check
          %p213 = pneg %p67
        $region14: #{tpu_custom_call.1} parent=11 // pred_check_branch
          %215 = sbr.rel (%p213) target = $region16
        $region15: #{tpu_custom_call.1} parent=11 // pred_region
          %217 = vsyncadd [#allocation6], 0
          %s218 = sshll.u32 %s1, 4
          %s219 = int_to_ptr.hbm [resolvable:$true] %s218
          %s220 = sshll.u32 [#allocation5], 4
          %s221 = int_to_ptr.vmem [resolvable:$true] %s220
          %226 = dma.hbm_to_vmem [thread:$0]  %s219, 1536, %s221, [#allocation6], 384, 384, 24
        $region16: #{tpu_custom_call.1} parent=11 // pred_fallthru
          _
        // Predicated region
        $region17: #{tpu_custom_call.1} parent=11 // pred_check
          %p227 = pneg %p88
        $region18: #{tpu_custom_call.1} parent=11 // pred_check_branch
          %229 = sbr.rel (%p227) target = $region20
        $region19: #{tpu_custom_call.1} parent=11 // pred_region
          _
        $region20: #{tpu_custom_call.1} parent=11 // pred_fallthru
          _
        // Predicated region
        $region21: #{tpu_custom_call.1} parent=11 // pred_check
          %p230 = pneg %p109
        $region22: #{tpu_custom_call.1} parent=11 // pred_check_branch
          %232 = sbr.rel (%p230) target = $region24
        $region23: #{tpu_custom_call.1} parent=11 // pred_region
          _
        $region24: #{tpu_custom_call.1} parent=11 // pred_fallthru
          _
        // Predicated region
        $region25: #{tpu_custom_call.1} parent=11 // pred_check
          %p233 = pneg %p130
        $region26: #{tpu_custom_call.1} parent=11 // pred_check_branch
          %235 = sbr.rel (%p233) target = $region28
        $region27: #{tpu_custom_call.1} parent=11 // pred_region
          %237 = vsyncadd [#allocation6], 0
          %s238 = sshll.u32 %s4, 4
          %s239 = int_to_ptr.hbm [resolvable:$true] %s238
          %s240 = sshll.u32 [#allocation7], 4
          %s241 = int_to_ptr.vmem [resolvable:$true] %s240
          %246 = dma.hbm_to_vmem [thread:$0]  %s239, 1536, %s241, [#allocation6], 384, 384, 24
        $region28: #{tpu_custom_call.1} parent=11 // pred_fallthru
          _
        // Predicated region
        $region29: #{tpu_custom_call.1} parent=11 // pred_check
          %p247 = pneg %p151
        $region30: #{tpu_custom_call.1} parent=11 // pred_check_branch
          %249 = sbr.rel (%p247) target = $region32
        $region31: #{tpu_custom_call.1} parent=11 // pred_region
          _
        $region32: #{tpu_custom_call.1} parent=11 // pred_fallthru
          _
        // Predicated region
        $region33: #{tpu_custom_call.1} parent=11 // pred_check
          %p250 = pneg %p172
        $region34: #{tpu_custom_call.1} parent=11 // pred_check_branch
          %252 = sbr.rel (%p250) target = $region36
        $region35: #{tpu_custom_call.1} parent=11 // pred_region
          _
        $region36: #{tpu_custom_call.1} parent=11 // pred_fallthru
          _
      $region12: #{tpu_custom_call.1} parent=5 // pred_fallthru
        _
      %p253 = scmp.lt.s32.totalorder %s20, 2
      // Predicated region
      $region37: #{tpu_custom_call.1} parent=5 // pred_check
        %p254 = pneg %p253
      $region38: #{tpu_custom_call.1} parent=5 // pred_check_branch
        %256 = sbr.rel (%p254) target = $region40
      $region39: #{tpu_custom_call.1} parent=5 // pred_region
        // Predicated region
        $region41: #{tpu_custom_call.1} parent=39 // pred_check
          %p257 = pneg %p40
        $region42: #{tpu_custom_call.1} parent=39 // pred_check_branch
          %259 = sbr.rel (%p257) target = $region44
        $region43: #{tpu_custom_call.1} parent=39 // pred_region
          %s260 = sand.u32 %s30, 1
          %s261 = scalar_lea.sflag [#allocation3], %s260
          %s262 = sand.u32 %s30, 1
          %s263 = smul.addr %s262, 96
          %s264 = scalar_lea.vmem [#allocation2], %s263
          %266 = vsyncadd %s261, 0
          %s267 = smul.addr %s20, 12
          %s268 = smul.addr %s267, 8
          %s269 = scalar_lea.hbm %s0, %s268
          %s270 = sshll.u32 %s269, 4
          %s271 = int_to_ptr.hbm [resolvable:$true] %s270
          %s272 = sshll.u32 %s264, 4
          %s273 = int_to_ptr.vmem [resolvable:$true] %s272
          %278 = dma.hbm_to_vmem [thread:$0]  %s271, 1536, %s273, %s261, 384, 384, 24
        $region44: #{tpu_custom_call.1} parent=39 // pred_fallthru
          _
      $region40: #{tpu_custom_call.1} parent=5 // pred_fallthru
        _
      %p279 = scmp.le.s32.totalorder 1, %s20
      %p280 = scmp.lt.s32.totalorder %s20, 3
      %p281 = pnand %p279, %p280
      %p282 = pneg %p281
      // Predicated region
      $region45: #{tpu_custom_call.1} parent=5 // pred_check
        _
      $region46: #{tpu_custom_call.1} parent=5 // pred_check_branch
        %284 = sbr.rel (%p281) target = $region48
      $region47: #{tpu_custom_call.1} parent=5 // pred_region
        %s285 = ssub.s32 %s20, 1
        %s286 = sand.u32 %s33, 1
        %s287 = scalar_lea.sflag [#allocation3], %s286
        %s288 = sand.u32 %s33, 1
        %s289 = smul.addr %s288, 96
        %s290 = scalar_lea.vmem [#allocation2], %s289
        // Predicated region
        $region49: #{tpu_custom_call.1} parent=47 // pred_check
          %p291 = pneg %p46
        $region50: #{tpu_custom_call.1} parent=47 // pred_check_branch
          %293 = sbr.rel (%p291) target = $region52
        $region51: #{tpu_custom_call.1} parent=47 // pred_region
          %295 = dma.done %s287, 1536
        $region52: #{tpu_custom_call.1} parent=47 // pred_fallthru
          _
        // Predicated region
        $region53: #{tpu_custom_call.1} parent=47 // pred_check
          %p296 = pneg %p67
        $region54: #{tpu_custom_call.1} parent=47 // pred_check_branch
          %298 = sbr.rel (%p296) target = $region56
        $region55: #{tpu_custom_call.1} parent=47 // pred_region
          %300 = dma.done [#allocation6], 1536
        $region56: #{tpu_custom_call.1} parent=47 // pred_fallthru
          _
        // Predicated region
        $region57: #{tpu_custom_call.1} parent=47 // pred_check
          %p301 = pneg %p130
        $region58: #{tpu_custom_call.1} parent=47 // pred_check_branch
          %303 = sbr.rel (%p301) target = $region60
        $region59: #{tpu_custom_call.1} parent=47 // pred_region
          %305 = dma.done [#allocation6], 1536
        $region60: #{tpu_custom_call.1} parent=47 // pred_fallthru
          _
        %s306 = sand.u32 %s33, 1
        %s307 = scalar_lea.sflag [#allocation3], %s306
        %s308 = sand.u32 %s33, 1
        %s309 = smul.addr %s308, 96
        %s310 = scalar_lea.vmem [#allocation2], %s309
        %p311 = pneg %p46
        %p312 = pneg %p43
        %p313 = pneg %p67
        %p314 = pneg %p64
        %p315 = pneg %p88
        %p316 = pneg %p85
        %p317 = pneg %p109
        %p318 = pneg %p106
        %p319 = pneg %p130
        %p320 = pneg %p127
        %p321 = pneg %p151
        %p322 = pneg %p148
        %p323 = pneg %p172
        %p324 = pneg %p169
        %p325 = pneg %p198
        %p326 = pneg %p195
        %s327 = sand.u32 %s185, 1
        %s328 = scalar_lea.sflag [#allocation4], %s327
        %s329 = sand.u32 %s185, 1
        %s330 = smul.addr %s329, 96
        %s331 = scalar_lea.vmem [#allocation8], %s330
        %v332 = vld [vmem:[%s290] sm:$0xff]
        %v333 = vld [vmem:[%s290 + $0x8] sm:$0xff]
        %v334 = vld [vmem:[%s290 + $0x10] sm:$0xff]
        %v335 = vld [vmem:[%s290 + $0x18] sm:$0xff]
        %v336 = vld [vmem:[%s290 + $0x20] sm:$0xff]
        %v337 = vld [vmem:[%s290 + $0x28] sm:$0xff]
        %v338 = vld [vmem:[%s290 + $0x30] sm:$0xff]
        %v339 = vld [vmem:[%s290 + $0x38] sm:$0xff]
        %v340 = vld [vmem:[%s290 + $0x40] sm:$0xff]
        %v341 = vld [vmem:[%s290 + $0x48] sm:$0xff]
        %v342 = vld [vmem:[%s290 + $0x50] sm:$0xff]
        %v343 = vld [vmem:[%s290 + $0x58] sm:$0xff]
        %v344 = vlaneseq
        %v345 = vand.u32 %v344, 127
        %v346 = vadd.s32 %v345, 128
        %v347 = vadd.s32 %v345, 256
        %vm348 = vcmp.lt.s32.totalorder %v345, 0
        %v349 = vsub.s32 0, %v345
        %v350 = vsel %vm348, %v349, %v345
        %v351 = vand.u32 %v350, 65535
        %v352 = vshrl.u32 %v350, 16
        %v354 = vmul.u32 %v351, 14564
        %v355 = vmul.u32 %v351, 58254
        %v356 = vmul.u32 %v352, 14564
        %v357 = vmul.u32 %v352, 58254
        %v358 = vshll.u32 %v355, 16
        %v359 = vshrl.u32 %v355, 16
        %v360 = vshll.u32 %v356, 16
        %v361 = vshrl.u32 %v356, 16
        %vm362 = vc.u32 %v354, %v358
        %v363 = vsel %vm362, 1, 0
        %v364 = vadd.s32 %v354, %v358
        %v365 = vadd.s32 %v357, %v363
        %vm366 = vc.u32 %v364, %v360
        %v367 = vsel %vm366, 1, 0
        %v368 = vadd.s32 %v364, %v360
        %v369 = vadd.s32 %v365, %v367
        %v370 = vadd.s32 %v369, %v359
        %v371 = vadd.s32 %v370, %v361
        %v372 = vshrl.u32 %v371, 4
        %v373 = vmul.u32 %v372, 18
        %v374 = vsub.s32 %v350, %v373
        %v375 = vsub.s32 0, %v374
        %v376 = vsel %vm348, %v375, %v374
        %vm377 = vcmp.lt.s32.totalorder %v346, 0
        %v378 = vsub.s32 0, %v346
        %v379 = vsel %vm377, %v378, %v346
        %v380 = vand.u32 %v379, 65535
        %v381 = vshrl.u32 %v379, 16
        %v383 = vmul.u32 %v380, 14564
        %v384 = vmul.u32 %v380, 58254
        %v385 = vmul.u32 %v381, 14564
        %v386 = vmul.u32 %v381, 58254
        %v387 = vshll.u32 %v384, 16
        %v388 = vshrl.u32 %v384, 16
        %v389 = vshll.u32 %v385, 16
        %v390 = vshrl.u32 %v385, 16
        %vm391 = vc.u32 %v383, %v387
        %v392 = vsel %vm391, 1, 0
        %v393 = vadd.s32 %v383, %v387
        %v394 = vadd.s32 %v386, %v392
        %vm395 = vc.u32 %v393, %v389
        %v396 = vsel %vm395, 1, 0
        %v397 = vadd.s32 %v393, %v389
        %v398 = vadd.s32 %v394, %v396
        %v399 = vadd.s32 %v398, %v388
        %v400 = vadd.s32 %v399, %v390
        %v401 = vshrl.u32 %v400, 4
        %v402 = vmul.u32 %v401, 18
        %v403 = vsub.s32 %v379, %v402
        %v404 = vsub.s32 0, %v403
        %v405 = vsel %vm377, %v404, %v403
        %vm406 = vcmp.lt.s32.totalorder %v347, 0
        %v407 = vsub.s32 0, %v347
        %v408 = vsel %vm406, %v407, %v347
        %v409 = vand.u32 %v408, 65535
        %v410 = vshrl.u32 %v408, 16
        %v412 = vmul.u32 %v409, 14564
        %v413 = vmul.u32 %v409, 58254
        %v414 = vmul.u32 %v410, 14564
        %v415 = vmul.u32 %v410, 58254
        %v416 = vshll.u32 %v413, 16
        %v417 = vshrl.u32 %v413, 16
        %v418 = vshll.u32 %v414, 16
        %v419 = vshrl.u32 %v414, 16
        %vm420 = vc.u32 %v412, %v416
        %v421 = vsel %vm420, 1, 0
        %v422 = vadd.s32 %v412, %v416
        %v423 = vadd.s32 %v415, %v421
        %vm424 = vc.u32 %v422, %v418
        %v425 = vsel %vm424, 1, 0
        %v426 = vadd.s32 %v422, %v418
        %v427 = vadd.s32 %v423, %v425
        %v428 = vadd.s32 %v427, %v417
        %v429 = vadd.s32 %v428, %v419
        %v430 = vshrl.u32 %v429, 4
        %v431 = vmul.u32 %v430, 18
        %v432 = vsub.s32 %v408, %v431
        %v433 = vsub.s32 0, %v432
        %v434 = vsel %vm406, %v433, %v432
        %vm435 = vcmp.ne.s32.totalorder %v376, 0
        %vm436 = vcmp.ne.s32.totalorder %v405, 0
        %vm437 = vcmp.ne.s32.totalorder %v434, 0
        %vm438 = vcmp.lt.s32.totalorder %v376, 0
        %vm439 = vcmp.lt.s32.totalorder %v405, 0
        %vm440 = vcmp.lt.s32.totalorder %v434, 0
        %vm441 = vmand %vm438, %vm435
        %vm442 = vmand %vm439, %vm436
        %vm443 = vmand %vm440, %vm437
        %v444 = vadd.s32 %v376, 18
        %v445 = vadd.s32 %v405, 18
        %v446 = vadd.s32 %v434, 18
        %v447 = vsel %vm441, %v444, %v376
        %v448 = vsel %vm442, %v445, %v405
        %v449 = vsel %vm443, %v446, %v434
        %vm450 = vcmp.lt.s32.totalorder %v447, 16
        %vm451 = vcmp.lt.s32.totalorder %v448, 16
        %vm452 = vcmp.lt.s32.totalorder %v449, 16
        %465 = vrot.lane.b32.xlu0 %v332, 19
        %v466 = vpop.permute.xlu0 %465
        %467 = vrot.lane.b32.xlu0 %v333, 19
        %v468 = vpop.permute.xlu0 %467
        %469 = vrot.lane.b32.xlu0 %v334, 19
        %v470 = vpop.permute.xlu0 %469
        %471 = vrot.lane.b32.xlu0 %v335, 19
        %v472 = vpop.permute.xlu0 %471
        %473 = vrot.lane.b32.xlu0 %v336, 19
        %v474 = vpop.permute.xlu0 %473
        %475 = vrot.lane.b32.xlu0 %v337, 19
        %v476 = vpop.permute.xlu0 %475
        %477 = vrot.lane.b32.xlu0 %v338, 19
        %v478 = vpop.permute.xlu0 %477
        %479 = vrot.lane.b32.xlu0 %v339, 19
        %v480 = vpop.permute.xlu0 %479
        %481 = vrot.lane.b32.xlu0 %v340, 19
        %v482 = vpop.permute.xlu0 %481
        %483 = vrot.lane.b32.xlu0 %v341, 19
        %v484 = vpop.permute.xlu0 %483
        %485 = vrot.lane.b32.xlu0 %v342, 19
        %v486 = vpop.permute.xlu0 %485
        %487 = vrot.lane.b32.xlu0 %v343, 19
        %v488 = vpop.permute.xlu0 %487
        %vm489 = vcmask 154624
        %v490 = vsel %vm489, %v466, %v468
        %v491 = vsel %vm489, %v468, %v470
        %v492 = vsel %vm489, %v472, %v474
        %v493 = vsel %vm489, %v474, %v476
        %v494 = vsel %vm489, %v478, %v480
        %v495 = vsel %vm489, %v480, %v482
        %v496 = vsel %vm489, %v484, %v486
        %v497 = vsel %vm489, %v486, %v488
        %v510 = vsel %vm489, 0.0, %v466
        %v511 = vsel %vm489, 0.0, %v472
        %v512 = vsel %vm489, 0.0, %v478
        %v513 = vsel %vm489, 0.0, %v484
        %vm514 = vcmask 416768
        %v515 = vsel %vm514, %v491, 0.0
        %v516 = vsel %vm514, %v493, 0.0
        %v517 = vsel %vm514, %v495, 0.0
        %v518 = vsel %vm514, %v497, 0.0
        %527 = vrot.lane.b32.xlu0 %v510, 127
        %v528 = vpop.permute.xlu0 %527
        %529 = vrot.lane.b32.xlu0 %v490, 127
        %v530 = vpop.permute.xlu0 %529
        %531 = vrot.lane.b32.xlu0 %v515, 127
        %v532 = vpop.permute.xlu0 %531
        %533 = vrot.lane.b32.xlu0 %v511, 127
        %v534 = vpop.permute.xlu0 %533
        %535 = vrot.lane.b32.xlu0 %v492, 127
        %v536 = vpop.permute.xlu0 %535
        %537 = vrot.lane.b32.xlu0 %v516, 127
        %v538 = vpop.permute.xlu0 %537
        %539 = vrot.lane.b32.xlu0 %v512, 127
        %v540 = vpop.permute.xlu0 %539
        %541 = vrot.lane.b32.xlu0 %v494, 127
        %v542 = vpop.permute.xlu0 %541
        %543 = vrot.lane.b32.xlu0 %v517, 127
        %v544 = vpop.permute.xlu0 %543
        %545 = vrot.lane.b32.xlu0 %v513, 127
        %v546 = vpop.permute.xlu0 %545
        %547 = vrot.lane.b32.xlu0 %v496, 127
        %v548 = vpop.permute.xlu0 %547
        %549 = vrot.lane.b32.xlu0 %v518, 127
        %v550 = vpop.permute.xlu0 %549
        %vm551 = vcmask 1039360
        %v552 = vsel %vm551, %v528, %v530
        %v553 = vsel %vm551, %v530, %v532
        %v554 = vsel %vm551, %v534, %v536
        %v555 = vsel %vm551, %v536, %v538
        %v556 = vsel %vm551, %v540, %v542
        %v557 = vsel %vm551, %v542, %v544
        %v558 = vsel %vm551, %v546, %v548
        %v559 = vsel %vm551, %v548, %v550
        %572 = vrot.lane.b32.xlu0 %v510, 126
        %v573 = vpop.permute.xlu0 %572
        %574 = vrot.lane.b32.xlu0 %v490, 126
        %v575 = vpop.permute.xlu0 %574
        %576 = vrot.lane.b32.xlu0 %v515, 126
        %v577 = vpop.permute.xlu0 %576
        %578 = vrot.lane.b32.xlu0 %v511, 126
        %v579 = vpop.permute.xlu0 %578
        %580 = vrot.lane.b32.xlu0 %v492, 126
        %v581 = vpop.permute.xlu0 %580
        %582 = vrot.lane.b32.xlu0 %v516, 126
        %v583 = vpop.permute.xlu0 %582
        %584 = vrot.lane.b32.xlu0 %v512, 126
        %v585 = vpop.permute.xlu0 %584
        %586 = vrot.lane.b32.xlu0 %v494, 126
        %v587 = vpop.permute.xlu0 %586
        %588 = vrot.lane.b32.xlu0 %v517, 126
        %v589 = vpop.permute.xlu0 %588
        %590 = vrot.lane.b32.xlu0 %v513, 126
        %v591 = vpop.permute.xlu0 %590
        %592 = vrot.lane.b32.xlu0 %v496, 126
        %v593 = vpop.permute.xlu0 %592
        %594 = vrot.lane.b32.xlu0 %v518, 126
        %v595 = vpop.permute.xlu0 %594
        %vm596 = vcmask 1031168
        %v597 = vsel %vm596, %v573, %v575
        %v598 = vsel %vm596, %v575, %v577
        %v599 = vsel %vm596, %v579, %v581
        %v600 = vsel %vm596, %v581, %v583
        %v601 = vsel %vm596, %v585, %v587
        %v602 = vsel %vm596, %v587, %v589
        %v603 = vsel %vm596, %v591, %v593
        %v604 = vsel %vm596, %v593, %v595
        %617 = vrot.lane.b32.xlu0 %v510, 110
        %v618 = vpop.permute.xlu0 %617
        %619 = vrot.lane.b32.xlu0 %v490, 110
        %v620 = vpop.permute.xlu0 %619
        %621 = vrot.lane.b32.xlu0 %v515, 110
        %v622 = vpop.permute.xlu0 %621
        %623 = vrot.lane.b32.xlu0 %v511, 110
        %v624 = vpop.permute.xlu0 %623
        %625 = vrot.lane.b32.xlu0 %v492, 110
        %v626 = vpop.permute.xlu0 %625
        %627 = vrot.lane.b32.xlu0 %v516, 110
        %v628 = vpop.permute.xlu0 %627
        %629 = vrot.lane.b32.xlu0 %v512, 110
        %v630 = vpop.permute.xlu0 %629
        %631 = vrot.lane.b32.xlu0 %v494, 110
        %v632 = vpop.permute.xlu0 %631
        %633 = vrot.lane.b32.xlu0 %v517, 110
        %v634 = vpop.permute.xlu0 %633
        %635 = vrot.lane.b32.xlu0 %v513, 110
        %v636 = vpop.permute.xlu0 %635
        %637 = vrot.lane.b32.xlu0 %v496, 110
        %v638 = vpop.permute.xlu0 %637
        %639 = vrot.lane.b32.xlu0 %v518, 110
        %v640 = vpop.permute.xlu0 %639
        %vm641 = vcmask 900096
        %v642 = vsel %vm641, %v618, %v620
        %v643 = vsel %vm641, %v620, %v622
        %v644 = vsel %vm641, %v624, %v626
        %v645 = vsel %vm641, %v626, %v628
        %v646 = vsel %vm641, %v630, %v632
        %v647 = vsel %vm641, %v632, %v634
        %v648 = vsel %vm641, %v636, %v638
        %v649 = vsel %vm641, %v638, %v640
        %662 = vrot.lane.b32.xlu0 %v510, 109
        %v663 = vpop.permute.xlu0 %662
        %664 = vrot.lane.b32.xlu0 %v490, 109
        %v665 = vpop.permute.xlu0 %664
        %666 = vrot.lane.b32.xlu0 %v515, 109
        %v667 = vpop.permute.xlu0 %666
        %668 = vrot.lane.b32.xlu0 %v511, 109
        %v669 = vpop.permute.xlu0 %668
        %670 = vrot.lane.b32.xlu0 %v492, 109
        %v671 = vpop.permute.xlu0 %670
        %672 = vrot.lane.b32.xlu0 %v516, 109
        %v673 = vpop.permute.xlu0 %672
        %674 = vrot.lane.b32.xlu0 %v512, 109
        %v675 = vpop.permute.xlu0 %674
        %676 = vrot.lane.b32.xlu0 %v494, 109
        %v677 = vpop.permute.xlu0 %676
        %678 = vrot.lane.b32.xlu0 %v517, 109
        %v679 = vpop.permute.xlu0 %678
        %680 = vrot.lane.b32.xlu0 %v513, 109
        %v681 = vpop.permute.xlu0 %680
        %682 = vrot.lane.b32.xlu0 %v496, 109
        %v683 = vpop.permute.xlu0 %682
        %684 = vrot.lane.b32.xlu0 %v518, 109
        %v685 = vpop.permute.xlu0 %684
        %vm686 = vcmask 891904
        %v687 = vsel %vm686, %v663, %v665
        %v688 = vsel %vm686, %v665, %v667
        %v689 = vsel %vm686, %v669, %v671
        %v690 = vsel %vm686, %v671, %v673
        %v691 = vsel %vm686, %v675, %v677
        %v692 = vsel %vm686, %v677, %v679
        %v693 = vsel %vm686, %v681, %v683
        %v694 = vsel %vm686, %v683, %v685
        %707 = vrot.lane.b32.xlu0 %v510, 108
        %v708 = vpop.permute.xlu0 %707
        %709 = vrot.lane.b32.xlu0 %v490, 108
        %v710 = vpop.permute.xlu0 %709
        %711 = vrot.lane.b32.xlu0 %v515, 108
        %v712 = vpop.permute.xlu0 %711
        %713 = vrot.lane.b32.xlu0 %v511, 108
        %v714 = vpop.permute.xlu0 %713
        %715 = vrot.lane.b32.xlu0 %v492, 108
        %v716 = vpop.permute.xlu0 %715
        %717 = vrot.lane.b32.xlu0 %v516, 108
        %v718 = vpop.permute.xlu0 %717
        %719 = vrot.lane.b32.xlu0 %v512, 108
        %v720 = vpop.permute.xlu0 %719
        %721 = vrot.lane.b32.xlu0 %v494, 108
        %v722 = vpop.permute.xlu0 %721
        %723 = vrot.lane.b32.xlu0 %v517, 108
        %v724 = vpop.permute.xlu0 %723
        %725 = vrot.lane.b32.xlu0 %v513, 108
        %v726 = vpop.permute.xlu0 %725
        %727 = vrot.lane.b32.xlu0 %v496, 108
        %v728 = vpop.permute.xlu0 %727
        %729 = vrot.lane.b32.xlu0 %v518, 108
        %v730 = vpop.permute.xlu0 %729
        %vm731 = vcmask 883712
        %v732 = vsel %vm731, %v708, %v710
        %v733 = vsel %vm731, %v710, %v712
        %v734 = vsel %vm731, %v714, %v716
        %v735 = vsel %vm731, %v716, %v718
        %v736 = vsel %vm731, %v720, %v722
        %v737 = vsel %vm731, %v722, %v724
        %v738 = vsel %vm731, %v726, %v728
        %v739 = vsel %vm731, %v728, %v730
        %752 = vrot.lane.b32.xlu0 %v510, 92
        %v753 = vpop.permute.xlu0 %752
        %754 = vrot.lane.b32.xlu0 %v490, 92
        %v755 = vpop.permute.xlu0 %754
        %756 = vrot.lane.b32.xlu0 %v515, 92
        %v757 = vpop.permute.xlu0 %756
        %758 = vrot.lane.b32.xlu0 %v511, 92
        %v759 = vpop.permute.xlu0 %758
        %760 = vrot.lane.b32.xlu0 %v492, 92
        %v761 = vpop.permute.xlu0 %760
        %762 = vrot.lane.b32.xlu0 %v516, 92
        %v763 = vpop.permute.xlu0 %762
        %764 = vrot.lane.b32.xlu0 %v512, 92
        %v765 = vpop.permute.xlu0 %764
        %766 = vrot.lane.b32.xlu0 %v494, 92
        %v767 = vpop.permute.xlu0 %766
        %768 = vrot.lane.b32.xlu0 %v517, 92
        %v769 = vpop.permute.xlu0 %768
        %770 = vrot.lane.b32.xlu0 %v513, 92
        %v771 = vpop.permute.xlu0 %770
        %772 = vrot.lane.b32.xlu0 %v496, 92
        %v773 = vpop.permute.xlu0 %772
        %774 = vrot.lane.b32.xlu0 %v518, 92
        %v775 = vpop.permute.xlu0 %774
        %vm776 = vcmask 752640
        %v777 = vsel %vm776, %v753, %v755
        %v778 = vsel %vm776, %v755, %v757
        %v779 = vsel %vm776, %v759, %v761
        %v780 = vsel %vm776, %v761, %v763
        %v781 = vsel %vm776, %v765, %v767
        %v782 = vsel %vm776, %v767, %v769
        %v783 = vsel %vm776, %v771, %v773
        %v784 = vsel %vm776, %v773, %v775
        %797 = vrot.lane.b32.xlu0 %v510, 91
        %v798 = vpop.permute.xlu0 %797
        %799 = vrot.lane.b32.xlu0 %v490, 91
        %v800 = vpop.permute.xlu0 %799
        %801 = vrot.lane.b32.xlu0 %v515, 91
        %v802 = vpop.permute.xlu0 %801
        %803 = vrot.lane.b32.xlu0 %v511, 91
        %v804 = vpop.permute.xlu0 %803
        %805 = vrot.lane.b32.xlu0 %v492, 91
        %v806 = vpop.permute.xlu0 %805
        %807 = vrot.lane.b32.xlu0 %v516, 91
        %v808 = vpop.permute.xlu0 %807
        %809 = vrot.lane.b32.xlu0 %v512, 91
        %v810 = vpop.permute.xlu0 %809
        %811 = vrot.lane.b32.xlu0 %v494, 91
        %v812 = vpop.permute.xlu0 %811
        %813 = vrot.lane.b32.xlu0 %v517, 91
        %v814 = vpop.permute.xlu0 %813
        %815 = vrot.lane.b32.xlu0 %v513, 91
        %v816 = vpop.permute.xlu0 %815
        %817 = vrot.lane.b32.xlu0 %v496, 91
        %v818 = vpop.permute.xlu0 %817
        %819 = vrot.lane.b32.xlu0 %v518, 91
        %v820 = vpop.permute.xlu0 %819
        %vm821 = vcmask 744448
        %v822 = vsel %vm821, %v798, %v800
        %v823 = vsel %vm821, %v800, %v802
        %v824 = vsel %vm821, %v804, %v806
        %v825 = vsel %vm821, %v806, %v808
        %v826 = vsel %vm821, %v810, %v812
        %v827 = vsel %vm821, %v812, %v814
        %v828 = vsel %vm821, %v816, %v818
        %v829 = vsel %vm821, %v818, %v820
        %842 = vrot.lane.b32.xlu0 %v510, 90
        %v843 = vpop.permute.xlu0 %842
        %844 = vrot.lane.b32.xlu0 %v490, 90
        %v845 = vpop.permute.xlu0 %844
        %846 = vrot.lane.b32.xlu0 %v515, 90
        %v847 = vpop.permute.xlu0 %846
        %848 = vrot.lane.b32.xlu0 %v511, 90
        %v849 = vpop.permute.xlu0 %848
        %850 = vrot.lane.b32.xlu0 %v492, 90
        %v851 = vpop.permute.xlu0 %850
        %852 = vrot.lane.b32.xlu0 %v516, 90
        %v853 = vpop.permute.xlu0 %852
        %854 = vrot.lane.b32.xlu0 %v512, 90
        %v855 = vpop.permute.xlu0 %854
        %856 = vrot.lane.b32.xlu0 %v494, 90
        %v857 = vpop.permute.xlu0 %856
        %858 = vrot.lane.b32.xlu0 %v517, 90
        %v859 = vpop.permute.xlu0 %858
        %860 = vrot.lane.b32.xlu0 %v513, 90
        %v861 = vpop.permute.xlu0 %860
        %862 = vrot.lane.b32.xlu0 %v496, 90
        %v863 = vpop.permute.xlu0 %862
        %864 = vrot.lane.b32.xlu0 %v518, 90
        %v865 = vpop.permute.xlu0 %864
        %vm866 = vcmask 736256
        %v867 = vsel %vm866, %v843, %v845
        %v868 = vsel %vm866, %v845, %v847
        %v869 = vsel %vm866, %v849, %v851
        %v870 = vsel %vm866, %v851, %v853
        %v871 = vsel %vm866, %v855, %v857
        %v872 = vsel %vm866, %v857, %v859
        %v873 = vsel %vm866, %v861, %v863
        %v874 = vsel %vm866, %v863, %v865
        %v887 = vld [vmem:[#allocation5] sm:$0xff]
        %v888 = vld [vmem:[#allocation5 + $0x8] sm:$0xff]
        %v889 = vld [vmem:[#allocation5 + $0x10] sm:$0xff]
        %v890 = vld [vmem:[#allocation5 + $0x18] sm:$0xff]
        %v891 = vld [vmem:[#allocation5 + $0x20] sm:$0xff]
        %v892 = vld [vmem:[#allocation5 + $0x28] sm:$0xff]
        %v893 = vld [vmem:[#allocation5 + $0x30] sm:$0xff]
        %v894 = vld [vmem:[#allocation5 + $0x38] sm:$0xff]
        %v895 = vld [vmem:[#allocation5 + $0x40] sm:$0xff]
        %v896 = vld [vmem:[#allocation5 + $0x48] sm:$0xff]
        %v897 = vld [vmem:[#allocation5 + $0x50] sm:$0xff]
        %v898 = vld [vmem:[#allocation5 + $0x58] sm:$0xff]
        %vm899 = vcmask 261120
        %v901 = vsel %vm899, %v889, 0
        %v904 = vsel %vm899, %v892, 0
        %v907 = vsel %vm899, %v895, 0
        %v910 = vsel %vm899, %v898, 0
        %912 = vmatpush.msra.mxu0 %v648
        %913 = vmatpush.msra.mxu0 %v646
        %914 = vmatpush.msra.mxu0 %v644
        %915 = vmatpush.msra.mxu0 %v642
        %916 = vmatpush.msra.mxu0 %v603
        %917 = vmatpush.msra.mxu0 %v601
        %918 = vmatpush.msra.mxu0 %v599
        %919 = vmatpush.msra.mxu0 %v597
        %920 = vmatpush.msra.mxu0 %v558
        %921 = vmatpush.msra.mxu0 %v556
        %922 = vmatpush.msra.mxu0 %v554
        %923 = vmatpush.msra.mxu0 %v552
        %924 = vmatpush.msra.mxu0 %v513
        %925 = vmatpush.msra.mxu0 %v512
        %926 = vmatpush.msra.mxu0 %v511
        %927 = vmatpush.msra.mxu0 %v510
        %928 = vmatmul.f32.gmra.mxu0 %v887
        %v929 = vpop.f32.mrf.mxu0
        %v930 = vadd.f32 0.0, %v929
        %931 = vmatmul.f32.gmra.mxu0 %v890
        %v932 = vpop.f32.mrf.mxu0
        %v933 = vadd.f32 0.0, %v932
        %934 = vmatmul.f32.gmra.mxu0 %v893
        %v935 = vpop.f32.mrf.mxu0
        %v936 = vadd.f32 0.0, %v935
        %937 = vmatmul.f32.gmra.mxu0 %v896
        %v938 = vpop.f32.mrf.mxu0
        %v939 = vadd.f32 0.0, %v938
        %940 = vdwg.mxu0
        %941 = vmatpush.msra.mxu0 %v828
        %942 = vmatpush.msra.mxu0 %v826
        %943 = vmatpush.msra.mxu0 %v824
        %944 = vmatpush.msra.mxu0 %v822
        %945 = vmatpush.msra.mxu0 %v783
        %946 = vmatpush.msra.mxu0 %v781
        %947 = vmatpush.msra.mxu0 %v779
        %948 = vmatpush.msra.mxu0 %v777
        %949 = vmatpush.msra.mxu0 %v738
        %950 = vmatpush.msra.mxu0 %v736
        %951 = vmatpush.msra.mxu0 %v734
        %952 = vmatpush.msra.mxu0 %v732
        %953 = vmatpush.msra.mxu0 %v693
        %954 = vmatpush.msra.mxu0 %v691
        %955 = vmatpush.msra.mxu0 %v689
        %956 = vmatpush.msra.mxu0 %v687
        %957 = vmatmul.f32.gmra.mxu0 %v888
        %v958 = vpop.f32.mrf.mxu0
        %v959 = vadd.f32 %v930, %v958
        %960 = vmatmul.f32.gmra.mxu0 %v891
        %v961 = vpop.f32.mrf.mxu0
        %v962 = vadd.f32 %v933, %v961
        %963 = vmatmul.f32.gmra.mxu0 %v894
        %v964 = vpop.f32.mrf.mxu0
        %v965 = vadd.f32 %v936, %v964
        %966 = vmatmul.f32.gmra.mxu0 %v897
        %v967 = vpop.f32.mrf.mxu0
        %v968 = vadd.f32 %v939, %v967
        %969 = vdwg.mxu0
        %970 = vmatpush.msra.mxu0 0.0
        %971 = vmatpush.msra.mxu0 0.0
        %972 = vmatpush.msra.mxu0 0.0
        %973 = vmatpush.msra.mxu0 0.0
        %974 = vmatpush.msra.mxu0 0.0
        %975 = vmatpush.msra.mxu0 0.0
        %976 = vmatpush.msra.mxu0 0.0
        %977 = vmatpush.msra.mxu0 0.0
        %978 = vmatpush.msra.mxu0 0.0
        %979 = vmatpush.msra.mxu0 0.0
        %980 = vmatpush.msra.mxu0 0.0
        %981 = vmatpush.msra.mxu0 0.0
        %982 = vmatpush.msra.mxu0 %v873
        %983 = vmatpush.msra.mxu0 %v871
        %984 = vmatpush.msra.mxu0 %v869
        %985 = vmatpush.msra.mxu0 %v867
        %986 = vmatmul.f32.gmra.mxu0 %v901
        %v987 = vpop.f32.mrf.mxu0
        %v988 = vadd.f32 %v959, %v987
        %989 = vmatmul.f32.gmra.mxu0 %v904
        %v990 = vpop.f32.mrf.mxu0
        %v991 = vadd.f32 %v962, %v990
        %992 = vmatmul.f32.gmra.mxu0 %v907
        %v993 = vpop.f32.mrf.mxu0
        %v994 = vadd.f32 %v965, %v993
        %995 = vmatmul.f32.gmra.mxu0 %v910
        %v996 = vpop.f32.mrf.mxu0
        %v997 = vadd.f32 %v968, %v996
        %998 = vdwg.mxu0
        %999 = vmatpush.msra.mxu0 %v649
        %1000 = vmatpush.msra.mxu0 %v647
        %1001 = vmatpush.msra.mxu0 %v645
        %1002 = vmatpush.msra.mxu0 %v643
        %1003 = vmatpush.msra.mxu0 %v604
        %1004 = vmatpush.msra.mxu0 %v602
        %1005 = vmatpush.msra.mxu0 %v600
        %1006 = vmatpush.msra.mxu0 %v598
        %1007 = vmatpush.msra.mxu0 %v559
        %1008 = vmatpush.msra.mxu0 %v557
        %1009 = vmatpush.msra.mxu0 %v555
        %1010 = vmatpush.msra.mxu0 %v553
        %1011 = vmatpush.msra.mxu0 %v496
        %1012 = vmatpush.msra.mxu0 %v494
        %1013 = vmatpush.msra.mxu0 %v492
        %1014 = vmatpush.msra.mxu0 %v490
        %1015 = vmatmul.f32.gmra.mxu0 %v887
        %v1016 = vpop.f32.mrf.mxu0
        %v1017 = vadd.f32 0.0, %v1016
        %1018 = vmatmul.f32.gmra.mxu0 %v890
        %v1019 = vpop.f32.mrf.mxu0
        %v1020 = vadd.f32 0.0, %v1019
        %1021 = vmatmul.f32.gmra.mxu0 %v893
        %v1022 = vpop.f32.mrf.mxu0
        %v1023 = vadd.f32 0.0, %v1022
        %1024 = vmatmul.f32.gmra.mxu0 %v896
        %v1025 = vpop.f32.mrf.mxu0
        %v1026 = vadd.f32 0.0, %v1025
        %1027 = vdwg.mxu0
        %1028 = vmatpush.msra.mxu0 %v829
        %1029 = vmatpush.msra.mxu0 %v827
        %1030 = vmatpush.msra.mxu0 %v825
        %1031 = vmatpush.msra.mxu0 %v823
        %1032 = vmatpush.msra.mxu0 %v784
        %1033 = vmatpush.msra.mxu0 %v782
        %1034 = vmatpush.msra.mxu0 %v780
        %1035 = vmatpush.msra.mxu0 %v778
        %1036 = vmatpush.msra.mxu0 %v739
        %1037 = vmatpush.msra.mxu0 %v737
        %1038 = vmatpush.msra.mxu0 %v735
        %1039 = vmatpush.msra.mxu0 %v733
        %1040 = vmatpush.msra.mxu0 %v694
        %1041 = vmatpush.msra.mxu0 %v692
        %1042 = vmatpush.msra.mxu0 %v690
        %1043 = vmatpush.msra.mxu0 %v688
        %1044 = vmatmul.f32.gmra.mxu0 %v888
        %v1045 = vpop.f32.mrf.mxu0
        %v1046 = vadd.f32 %v1017, %v1045
        %1047 = vmatmul.f32.gmra.mxu0 %v891
        %v1048 = vpop.f32.mrf.mxu0
        %v1049 = vadd.f32 %v1020, %v1048
        %1050 = vmatmul.f32.gmra.mxu0 %v894
        %v1051 = vpop.f32.mrf.mxu0
        %v1052 = vadd.f32 %v1023, %v1051
        %1053 = vmatmul.f32.gmra.mxu0 %v897
        %v1054 = vpop.f32.mrf.mxu0
        %v1055 = vadd.f32 %v1026, %v1054
        %1056 = vdwg.mxu0
        %1057 = vmatpush.msra.mxu0 0.0
        %1058 = vmatpush.msra.mxu0 0.0
        %1059 = vmatpush.msra.mxu0 0.0
        %1060 = vmatpush.msra.mxu0 0.0
        %1061 = vmatpush.msra.mxu0 0.0
        %1062 = vmatpush.msra.mxu0 0.0
        %1063 = vmatpush.msra.mxu0 0.0
        %1064 = vmatpush.msra.mxu0 0.0
        %1065 = vmatpush.msra.mxu0 0.0
        %1066 = vmatpush.msra.mxu0 0.0
        %1067 = vmatpush.msra.mxu0 0.0
        %1068 = vmatpush.msra.mxu0 0.0
        %1069 = vmatpush.msra.mxu0 %v874
        %1070 = vmatpush.msra.mxu0 %v872
        %1071 = vmatpush.msra.mxu0 %v870
        %1072 = vmatpush.msra.mxu0 %v868
        %1073 = vmatmul.f32.gmra.mxu0 %v901
        %v1074 = vpop.f32.mrf.mxu0
        %v1075 = vadd.f32 %v1046, %v1074
        %1076 = vmatmul.f32.gmra.mxu0 %v904
        %v1077 = vpop.f32.mrf.mxu0
        %v1078 = vadd.f32 %v1049, %v1077
        %1079 = vmatmul.f32.gmra.mxu0 %v907
        %v1080 = vpop.f32.mrf.mxu0
        %v1081 = vadd.f32 %v1052, %v1080
        %1082 = vmatmul.f32.gmra.mxu0 %v910
        %v1083 = vpop.f32.mrf.mxu0
        %v1084 = vadd.f32 %v1055, %v1083
        %1085 = vdwg.mxu0
        %1086 = vmatpush.msra.mxu0 %v640
        %1087 = vmatpush.msra.mxu0 %v634
        %1088 = vmatpush.msra.mxu0 %v628
        %1089 = vmatpush.msra.mxu0 %v622
        %1090 = vmatpush.msra.mxu0 %v595
        %1091 = vmatpush.msra.mxu0 %v589
        %1092 = vmatpush.msra.mxu0 %v583
        %1093 = vmatpush.msra.mxu0 %v577
        %1094 = vmatpush.msra.mxu0 %v550
        %1095 = vmatpush.msra.mxu0 %v544
        %1096 = vmatpush.msra.mxu0 %v538
        %1097 = vmatpush.msra.mxu0 %v532
        %1098 = vmatpush.msra.mxu0 %v518
        %1099 = vmatpush.msra.mxu0 %v517
        %1100 = vmatpush.msra.mxu0 %v516
        %1101 = vmatpush.msra.mxu0 %v515
        %1102 = vmatmul.f32.gmra.mxu0 %v887
        %v1103 = vpop.f32.mrf.mxu0
        %v1104 = vadd.f32 0.0, %v1103
        %1105 = vmatmul.f32.gmra.mxu0 %v890
        %v1106 = vpop.f32.mrf.mxu0
        %v1107 = vadd.f32 0.0, %v1106
        %1108 = vmatmul.f32.gmra.mxu0 %v893
        %v1109 = vpop.f32.mrf.mxu0
        %v1110 = vadd.f32 0.0, %v1109
        %1111 = vmatmul.f32.gmra.mxu0 %v896
        %v1112 = vpop.f32.mrf.mxu0
        %v1113 = vadd.f32 0.0, %v1112
        %1114 = vdwg.mxu0
        %1115 = vmatpush.msra.mxu0 %v820
        %1116 = vmatpush.msra.mxu0 %v814
        %1117 = vmatpush.msra.mxu0 %v808
        %1118 = vmatpush.msra.mxu0 %v802
        %1119 = vmatpush.msra.mxu0 %v775
        %1120 = vmatpush.msra.mxu0 %v769
        %1121 = vmatpush.msra.mxu0 %v763
        %1122 = vmatpush.msra.mxu0 %v757
        %1123 = vmatpush.msra.mxu0 %v730
        %1124 = vmatpush.msra.mxu0 %v724
        %1125 = vmatpush.msra.mxu0 %v718
        %1126 = vmatpush.msra.mxu0 %v712
        %1127 = vmatpush.msra.mxu0 %v685
        %1128 = vmatpush.msra.mxu0 %v679
        %1129 = vmatpush.msra.mxu0 %v673
        %1130 = vmatpush.msra.mxu0 %v667
        %1131 = vmatmul.f32.gmra.mxu0 %v888
        %v1132 = vpop.f32.mrf.mxu0
        %v1133 = vadd.f32 %v1104, %v1132
        %1134 = vmatmul.f32.gmra.mxu0 %v891
        %v1135 = vpop.f32.mrf.mxu0
        %v1136 = vadd.f32 %v1107, %v1135
        %1137 = vmatmul.f32.gmra.mxu0 %v894
        %v1138 = vpop.f32.mrf.mxu0
        %v1139 = vadd.f32 %v1110, %v1138
        %1140 = vmatmul.f32.gmra.mxu0 %v897
        %v1141 = vpop.f32.mrf.mxu0
        %v1142 = vadd.f32 %v1113, %v1141
        %1143 = vdwg.mxu0
        %1144 = vmatpush.msra.mxu0 0.0
        %1145 = vmatpush.msra.mxu0 0.0
        %1146 = vmatpush.msra.mxu0 0.0
        %1147 = vmatpush.msra.mxu0 0.0
        %1148 = vmatpush.msra.mxu0 0.0
        %1149 = vmatpush.msra.mxu0 0.0
        %1150 = vmatpush.msra.mxu0 0.0
        %1151 = vmatpush.msra.mxu0 0.0
        %1152 = vmatpush.msra.mxu0 0.0
        %1153 = vmatpush.msra.mxu0 0.0
        %1154 = vmatpush.msra.mxu0 0.0
        %1155 = vmatpush.msra.mxu0 0.0
        %1156 = vmatpush.msra.mxu0 %v865
        %1157 = vmatpush.msra.mxu0 %v859
        %1158 = vmatpush.msra.mxu0 %v853
        %1159 = vmatpush.msra.mxu0 %v847
        %1160 = vmatmul.f32.gmra.mxu0 %v901
        %v1161 = vpop.f32.mrf.mxu0
        %v1162 = vadd.f32 %v1133, %v1161
        %1163 = vmatmul.f32.gmra.mxu0 %v904
        %v1164 = vpop.f32.mrf.mxu0
        %v1165 = vadd.f32 %v1136, %v1164
        %1166 = vmatmul.f32.gmra.mxu0 %v907
        %v1167 = vpop.f32.mrf.mxu0
        %v1168 = vadd.f32 %v1139, %v1167
        %1169 = vmatmul.f32.gmra.mxu0 %v910
        %v1170 = vpop.f32.mrf.mxu0
        %v1171 = vadd.f32 %v1142, %v1170
        %1172 = vdwg.mxu0
        %v1173 = vld [vmem:[%s2] sm:$0xff]
        %v1174 = vld [vmem:[%s2 + $0x8] sm:$0xff]
        %v1175 = vld [vmem:[%s2 + $0x10] sm:$0xff]
        %v1176 = vld [vmem:[%s2 + $0x18] sm:$0xff]
        %1178 = vset.pattern.permute.xlu0 0
        %1179 = vperm.xlu0 %1178, %v1173
        %v1180 = vpop.permute.xlu0 %1179
        %1183 = vset.pattern.permute.xlu0 0
        %1184 = vperm.xlu0 %1183, %v1174
        %v1185 = vpop.permute.xlu0 %1184
        %1188 = vset.pattern.permute.xlu0 0
        %1189 = vperm.xlu0 %1188, %v1175
        %v1190 = vpop.permute.xlu0 %1189
        %1193 = vset.pattern.permute.xlu0 0
        %1194 = vperm.xlu0 %1193, %v1176
        %v1195 = vpop.permute.xlu0 %1194
        %v1197 = vmul.f32 %v988, %v1180
        %v1198 = vmul.f32 %v1075, %v1180
        %v1199 = vmul.f32 %v1162, %v1180
        %v1200 = vmul.f32 %v991, %v1185
        %v1201 = vmul.f32 %v1078, %v1185
        %v1202 = vmul.f32 %v1165, %v1185
        %v1203 = vmul.f32 %v994, %v1190
        %v1204 = vmul.f32 %v1081, %v1190
        %v1205 = vmul.f32 %v1168, %v1190
        %v1206 = vmul.f32 %v997, %v1195
        %v1207 = vmul.f32 %v1084, %v1195
        %v1208 = vmul.f32 %v1171, %v1195
        %v1209 = vld [vmem:[%s3] sm:$0xff]
        %v1210 = vld [vmem:[%s3 + $0x8] sm:$0xff]
        %v1211 = vld [vmem:[%s3 + $0x10] sm:$0xff]
        %v1212 = vld [vmem:[%s3 + $0x18] sm:$0xff]
        %1214 = vset.pattern.permute.xlu0 0
        %1215 = vperm.xlu0 %1214, %v1209
        %v1216 = vpop.permute.xlu0 %1215
        %1219 = vset.pattern.permute.xlu0 0
        %1220 = vperm.xlu0 %1219, %v1210
        %v1221 = vpop.permute.xlu0 %1220
        %1224 = vset.pattern.permute.xlu0 0
        %1225 = vperm.xlu0 %1224, %v1211
        %v1226 = vpop.permute.xlu0 %1225
        %1229 = vset.pattern.permute.xlu0 0
        %1230 = vperm.xlu0 %1229, %v1212
        %v1231 = vpop.permute.xlu0 %1230
        %v1233 = vadd.f32 %v1197, %v1216
        %v1234 = vadd.f32 %v1198, %v1216
        %v1235 = vadd.f32 %v1199, %v1216
        %v1236 = vadd.f32 %v1200, %v1221
        %v1237 = vadd.f32 %v1201, %v1221
        %v1238 = vadd.f32 %v1202, %v1221
        %v1239 = vadd.f32 %v1203, %v1226
        %v1240 = vadd.f32 %v1204, %v1226
        %v1241 = vadd.f32 %v1205, %v1226
        %v1242 = vadd.f32 %v1206, %v1231
        %v1243 = vadd.f32 %v1207, %v1231
        %v1244 = vadd.f32 %v1208, %v1231
        %v1245 = vmax.f32 %v1233, 0.0
        %v1246 = vmax.f32 %v1234, 0.0
        %v1247 = vmax.f32 %v1235, 0.0
        %v1248 = vmax.f32 %v1236, 0.0
        %v1249 = vmax.f32 %v1237, 0.0
        %v1250 = vmax.f32 %v1238, 0.0
        %v1251 = vmax.f32 %v1239, 0.0
        %v1252 = vmax.f32 %v1240, 0.0
        %v1253 = vmax.f32 %v1241, 0.0
        %v1254 = vmax.f32 %v1242, 0.0
        %v1255 = vmax.f32 %v1243, 0.0
        %v1256 = vmax.f32 %v1244, 0.0
        %v1257 = vsel %vm450, 1, 0
        %v1258 = vsel %vm451, 1, 0
        %v1259 = vsel %vm452, 1, 0
        %vm1260 = vcmp.eq.s32.totalorder %v1257, 1
        %vm1261 = vcmp.eq.s32.totalorder %v1258, 1
        %vm1262 = vcmp.eq.s32.totalorder %v1259, 1
        %v1263 = vsel %vm1260, %v1245, 0.0
        %v1264 = vsel %vm1261, %v1246, 0.0
        %v1265 = vsel %vm1262, %v1247, 0.0
        %v1266 = vsel %vm1260, %v1248, 0.0
        %v1267 = vsel %vm1261, %v1249, 0.0
        %v1268 = vsel %vm1262, %v1250, 0.0
        %v1269 = vsel %vm1260, %v1251, 0.0
        %v1270 = vsel %vm1261, %v1252, 0.0
        %v1271 = vsel %vm1262, %v1253, 0.0
        %v1272 = vsel %vm1260, %v1254, 0.0
        %v1273 = vsel %vm1261, %v1255, 0.0
        %v1274 = vsel %vm1262, %v1256, 0.0
        %1287 = vrot.lane.b32.xlu0 %v1263, 19
        %v1288 = vpop.permute.xlu0 %1287
        %1289 = vrot.lane.b32.xlu0 %v1264, 19
        %v1290 = vpop.permute.xlu0 %1289
        %1291 = vrot.lane.b32.xlu0 %v1265, 19
        %v1292 = vpop.permute.xlu0 %1291
        %1293 = vrot.lane.b32.xlu0 %v1266, 19
        %v1294 = vpop.permute.xlu0 %1293
        %1295 = vrot.lane.b32.xlu0 %v1267, 19
        %v1296 = vpop.permute.xlu0 %1295
        %1297 = vrot.lane.b32.xlu0 %v1268, 19
        %v1298 = vpop.permute.xlu0 %1297
        %1299 = vrot.lane.b32.xlu0 %v1269, 19
        %v1300 = vpop.permute.xlu0 %1299
        %1301 = vrot.lane.b32.xlu0 %v1270, 19
        %v1302 = vpop.permute.xlu0 %1301
        %1303 = vrot.lane.b32.xlu0 %v1271, 19
        %v1304 = vpop.permute.xlu0 %1303
        %1305 = vrot.lane.b32.xlu0 %v1272, 19
        %v1306 = vpop.permute.xlu0 %1305
        %1307 = vrot.lane.b32.xlu0 %v1273, 19
        %v1308 = vpop.permute.xlu0 %1307
        %1309 = vrot.lane.b32.xlu0 %v1274, 19
        %v1310 = vpop.permute.xlu0 %1309
        %v1311 = vsel %vm489, %v1288, %v1290
        %v1312 = vsel %vm489, %v1290, %v1292
        %v1313 = vsel %vm489, %v1294, %v1296
        %v1314 = vsel %vm489, %v1296, %v1298
        %v1315 = vsel %vm489, %v1300, %v1302
        %v1316 = vsel %vm489, %v1302, %v1304
        %v1317 = vsel %vm489, %v1306, %v1308
        %v1318 = vsel %vm489, %v1308, %v1310
        %v1331 = vsel %vm489, 0.0, %v1288
        %v1332 = vsel %vm489, 0.0, %v1294
        %v1333 = vsel %vm489, 0.0, %v1300
        %v1334 = vsel %vm489, 0.0, %v1306
        %v1335 = vsel %vm514, %v1312, 0.0
        %v1336 = vsel %vm514, %v1314, 0.0
        %v1337 = vsel %vm514, %v1316, 0.0
        %v1338 = vsel %vm514, %v1318, 0.0
        %1347 = vrot.lane.b32.xlu0 %v1331, 127
        %v1348 = vpop.permute.xlu0 %1347
        %1349 = vrot.lane.b32.xlu0 %v1311, 127
        %v1350 = vpop.permute.xlu0 %1349
        %1351 = vrot.lane.b32.xlu0 %v1335, 127
        %v1352 = vpop.permute.xlu0 %1351
        %1353 = vrot.lane.b32.xlu0 %v1332, 127
        %v1354 = vpop.permute.xlu0 %1353
        %1355 = vrot.lane.b32.xlu0 %v1313, 127
        %v1356 = vpop.permute.xlu0 %1355
        %1357 = vrot.lane.b32.xlu0 %v1336, 127
        %v1358 = vpop.permute.xlu0 %1357
        %1359 = vrot.lane.b32.xlu0 %v1333, 127
        %v1360 = vpop.permute.xlu0 %1359
        %1361 = vrot.lane.b32.xlu0 %v1315, 127
        %v1362 = vpop.permute.xlu0 %1361
        %1363 = vrot.lane.b32.xlu0 %v1337, 127
        %v1364 = vpop.permute.xlu0 %1363
        %1365 = vrot.lane.b32.xlu0 %v1334, 127
        %v1366 = vpop.permute.xlu0 %1365
        %1367 = vrot.lane.b32.xlu0 %v1317, 127
        %v1368 = vpop.permute.xlu0 %1367
        %1369 = vrot.lane.b32.xlu0 %v1338, 127
        %v1370 = vpop.permute.xlu0 %1369
        %v1371 = vsel %vm551, %v1348, %v1350
        %v1372 = vsel %vm551, %v1350, %v1352
        %v1373 = vsel %vm551, %v1354, %v1356
        %v1374 = vsel %vm551, %v1356, %v1358
        %v1375 = vsel %vm551, %v1360, %v1362
        %v1376 = vsel %vm551, %v1362, %v1364
        %v1377 = vsel %vm551, %v1366, %v1368
        %v1378 = vsel %vm551, %v1368, %v1370
        %1391 = vrot.lane.b32.xlu0 %v1331, 126
        %v1392 = vpop.permute.xlu0 %1391
        %1393 = vrot.lane.b32.xlu0 %v1311, 126
        %v1394 = vpop.permute.xlu0 %1393
        %1395 = vrot.lane.b32.xlu0 %v1335, 126
        %v1396 = vpop.permute.xlu0 %1395
        %1397 = vrot.lane.b32.xlu0 %v1332, 126
        %v1398 = vpop.permute.xlu0 %1397
        %1399 = vrot.lane.b32.xlu0 %v1313, 126
        %v1400 = vpop.permute.xlu0 %1399
        %1401 = vrot.lane.b32.xlu0 %v1336, 126
        %v1402 = vpop.permute.xlu0 %1401
        %1403 = vrot.lane.b32.xlu0 %v1333, 126
        %v1404 = vpop.permute.xlu0 %1403
        %1405 = vrot.lane.b32.xlu0 %v1315, 126
        %v1406 = vpop.permute.xlu0 %1405
        %1407 = vrot.lane.b32.xlu0 %v1337, 126
        %v1408 = vpop.permute.xlu0 %1407
        %1409 = vrot.lane.b32.xlu0 %v1334, 126
        %v1410 = vpop.permute.xlu0 %1409
        %1411 = vrot.lane.b32.xlu0 %v1317, 126
        %v1412 = vpop.permute.xlu0 %1411
        %1413 = vrot.lane.b32.xlu0 %v1338, 126
        %v1414 = vpop.permute.xlu0 %1413
        %v1415 = vsel %vm596, %v1392, %v1394
        %v1416 = vsel %vm596, %v1394, %v1396
        %v1417 = vsel %vm596, %v1398, %v1400
        %v1418 = vsel %vm596, %v1400, %v1402
        %v1419 = vsel %vm596, %v1404, %v1406
        %v1420 = vsel %vm596, %v1406, %v1408
        %v1421 = vsel %vm596, %v1410, %v1412
        %v1422 = vsel %vm596, %v1412, %v1414
        %1435 = vrot.lane.b32.xlu0 %v1331, 110
        %v1436 = vpop.permute.xlu0 %1435
        %1437 = vrot.lane.b32.xlu0 %v1311, 110
        %v1438 = vpop.permute.xlu0 %1437
        %1439 = vrot.lane.b32.xlu0 %v1335, 110
        %v1440 = vpop.permute.xlu0 %1439
        %1441 = vrot.lane.b32.xlu0 %v1332, 110
        %v1442 = vpop.permute.xlu0 %1441
        %1443 = vrot.lane.b32.xlu0 %v1313, 110
        %v1444 = vpop.permute.xlu0 %1443
        %1445 = vrot.lane.b32.xlu0 %v1336, 110
        %v1446 = vpop.permute.xlu0 %1445
        %1447 = vrot.lane.b32.xlu0 %v1333, 110
        %v1448 = vpop.permute.xlu0 %1447
        %1449 = vrot.lane.b32.xlu0 %v1315, 110
        %v1450 = vpop.permute.xlu0 %1449
        %1451 = vrot.lane.b32.xlu0 %v1337, 110
        %v1452 = vpop.permute.xlu0 %1451
        %1453 = vrot.lane.b32.xlu0 %v1334, 110
        %v1454 = vpop.permute.xlu0 %1453
        %1455 = vrot.lane.b32.xlu0 %v1317, 110
        %v1456 = vpop.permute.xlu0 %1455
        %1457 = vrot.lane.b32.xlu0 %v1338, 110
        %v1458 = vpop.permute.xlu0 %1457
        %v1459 = vsel %vm641, %v1436, %v1438
        %v1460 = vsel %vm641, %v1438, %v1440
        %v1461 = vsel %vm641, %v1442, %v1444
        %v1462 = vsel %vm641, %v1444, %v1446
        %v1463 = vsel %vm641, %v1448, %v1450
        %v1464 = vsel %vm641, %v1450, %v1452
        %v1465 = vsel %vm641, %v1454, %v1456
        %v1466 = vsel %vm641, %v1456, %v1458
        %1479 = vrot.lane.b32.xlu0 %v1331, 109
        %v1480 = vpop.permute.xlu0 %1479
        %1481 = vrot.lane.b32.xlu0 %v1311, 109
        %v1482 = vpop.permute.xlu0 %1481
        %1483 = vrot.lane.b32.xlu0 %v1335, 109
        %v1484 = vpop.permute.xlu0 %1483
        %1485 = vrot.lane.b32.xlu0 %v1332, 109
        %v1486 = vpop.permute.xlu0 %1485
        %1487 = vrot.lane.b32.xlu0 %v1313, 109
        %v1488 = vpop.permute.xlu0 %1487
        %1489 = vrot.lane.b32.xlu0 %v1336, 109
        %v1490 = vpop.permute.xlu0 %1489
        %1491 = vrot.lane.b32.xlu0 %v1333, 109
        %v1492 = vpop.permute.xlu0 %1491
        %1493 = vrot.lane.b32.xlu0 %v1315, 109
        %v1494 = vpop.permute.xlu0 %1493
        %1495 = vrot.lane.b32.xlu0 %v1337, 109
        %v1496 = vpop.permute.xlu0 %1495
        %1497 = vrot.lane.b32.xlu0 %v1334, 109
        %v1498 = vpop.permute.xlu0 %1497
        %1499 = vrot.lane.b32.xlu0 %v1317, 109
        %v1500 = vpop.permute.xlu0 %1499
        %1501 = vrot.lane.b32.xlu0 %v1338, 109
        %v1502 = vpop.permute.xlu0 %1501
        %v1503 = vsel %vm686, %v1480, %v1482
        %v1504 = vsel %vm686, %v1482, %v1484
        %v1505 = vsel %vm686, %v1486, %v1488
        %v1506 = vsel %vm686, %v1488, %v1490
        %v1507 = vsel %vm686, %v1492, %v1494
        %v1508 = vsel %vm686, %v1494, %v1496
        %v1509 = vsel %vm686, %v1498, %v1500
        %v1510 = vsel %vm686, %v1500, %v1502
        %1523 = vrot.lane.b32.xlu0 %v1331, 108
        %v1524 = vpop.permute.xlu0 %1523
        %1525 = vrot.lane.b32.xlu0 %v1311, 108
        %v1526 = vpop.permute.xlu0 %1525
        %1527 = vrot.lane.b32.xlu0 %v1335, 108
        %v1528 = vpop.permute.xlu0 %1527
        %1529 = vrot.lane.b32.xlu0 %v1332, 108
        %v1530 = vpop.permute.xlu0 %1529
        %1531 = vrot.lane.b32.xlu0 %v1313, 108
        %v1532 = vpop.permute.xlu0 %1531
        %1533 = vrot.lane.b32.xlu0 %v1336, 108
        %v1534 = vpop.permute.xlu0 %1533
        %1535 = vrot.lane.b32.xlu0 %v1333, 108
        %v1536 = vpop.permute.xlu0 %1535
        %1537 = vrot.lane.b32.xlu0 %v1315, 108
        %v1538 = vpop.permute.xlu0 %1537
        %1539 = vrot.lane.b32.xlu0 %v1337, 108
        %v1540 = vpop.permute.xlu0 %1539
        %1541 = vrot.lane.b32.xlu0 %v1334, 108
        %v1542 = vpop.permute.xlu0 %1541
        %1543 = vrot.lane.b32.xlu0 %v1317, 108
        %v1544 = vpop.permute.xlu0 %1543
        %1545 = vrot.lane.b32.xlu0 %v1338, 108
        %v1546 = vpop.permute.xlu0 %1545
        %v1547 = vsel %vm731, %v1524, %v1526
        %v1548 = vsel %vm731, %v1526, %v1528
        %v1549 = vsel %vm731, %v1530, %v1532
        %v1550 = vsel %vm731, %v1532, %v1534
        %v1551 = vsel %vm731, %v1536, %v1538
        %v1552 = vsel %vm731, %v1538, %v1540
        %v1553 = vsel %vm731, %v1542, %v1544
        %v1554 = vsel %vm731, %v1544, %v1546
        %1567 = vrot.lane.b32.xlu0 %v1331, 92
        %v1568 = vpop.permute.xlu0 %1567
        %1569 = vrot.lane.b32.xlu0 %v1311, 92
        %v1570 = vpop.permute.xlu0 %1569
        %1571 = vrot.lane.b32.xlu0 %v1335, 92
        %v1572 = vpop.permute.xlu0 %1571
        %1573 = vrot.lane.b32.xlu0 %v1332, 92
        %v1574 = vpop.permute.xlu0 %1573
        %1575 = vrot.lane.b32.xlu0 %v1313, 92
        %v1576 = vpop.permute.xlu0 %1575
        %1577 = vrot.lane.b32.xlu0 %v1336, 92
        %v1578 = vpop.permute.xlu0 %1577
        %1579 = vrot.lane.b32.xlu0 %v1333, 92
        %v1580 = vpop.permute.xlu0 %1579
        %1581 = vrot.lane.b32.xlu0 %v1315, 92
        %v1582 = vpop.permute.xlu0 %1581
        %1583 = vrot.lane.b32.xlu0 %v1337, 92
        %v1584 = vpop.permute.xlu0 %1583
        %1585 = vrot.lane.b32.xlu0 %v1334, 92
        %v1586 = vpop.permute.xlu0 %1585
        %1587 = vrot.lane.b32.xlu0 %v1317, 92
        %v1588 = vpop.permute.xlu0 %1587
        %1589 = vrot.lane.b32.xlu0 %v1338, 92
        %v1590 = vpop.permute.xlu0 %1589
        %v1591 = vsel %vm776, %v1568, %v1570
        %v1592 = vsel %vm776, %v1570, %v1572
        %v1593 = vsel %vm776, %v1574, %v1576
        %v1594 = vsel %vm776, %v1576, %v1578
        %v1595 = vsel %vm776, %v1580, %v1582
        %v1596 = vsel %vm776, %v1582, %v1584
        %v1597 = vsel %vm776, %v1586, %v1588
        %v1598 = vsel %vm776, %v1588, %v1590
        %1611 = vrot.lane.b32.xlu0 %v1331, 91
        %v1612 = vpop.permute.xlu0 %1611
        %1613 = vrot.lane.b32.xlu0 %v1311, 91
        %v1614 = vpop.permute.xlu0 %1613
        %1615 = vrot.lane.b32.xlu0 %v1335, 91
        %v1616 = vpop.permute.xlu0 %1615
        %1617 = vrot.lane.b32.xlu0 %v1332, 91
        %v1618 = vpop.permute.xlu0 %1617
        %1619 = vrot.lane.b32.xlu0 %v1313, 91
        %v1620 = vpop.permute.xlu0 %1619
        %1621 = vrot.lane.b32.xlu0 %v1336, 91
        %v1622 = vpop.permute.xlu0 %1621
        %1623 = vrot.lane.b32.xlu0 %v1333, 91
        %v1624 = vpop.permute.xlu0 %1623
        %1625 = vrot.lane.b32.xlu0 %v1315, 91
        %v1626 = vpop.permute.xlu0 %1625
        %1627 = vrot.lane.b32.xlu0 %v1337, 91
        %v1628 = vpop.permute.xlu0 %1627
        %1629 = vrot.lane.b32.xlu0 %v1334, 91
        %v1630 = vpop.permute.xlu0 %1629
        %1631 = vrot.lane.b32.xlu0 %v1317, 91
        %v1632 = vpop.permute.xlu0 %1631
        %1633 = vrot.lane.b32.xlu0 %v1338, 91
        %v1634 = vpop.permute.xlu0 %1633
        %v1635 = vsel %vm821, %v1612, %v1614
        %v1636 = vsel %vm821, %v1614, %v1616
        %v1637 = vsel %vm821, %v1618, %v1620
        %v1638 = vsel %vm821, %v1620, %v1622
        %v1639 = vsel %vm821, %v1624, %v1626
        %v1640 = vsel %vm821, %v1626, %v1628
        %v1641 = vsel %vm821, %v1630, %v1632
        %v1642 = vsel %vm821, %v1632, %v1634
        %1655 = vrot.lane.b32.xlu0 %v1331, 90
        %v1656 = vpop.permute.xlu0 %1655
        %1657 = vrot.lane.b32.xlu0 %v1311, 90
        %v1658 = vpop.permute.xlu0 %1657
        %1659 = vrot.lane.b32.xlu0 %v1335, 90
        %v1660 = vpop.permute.xlu0 %1659
        %1661 = vrot.lane.b32.xlu0 %v1332, 90
        %v1662 = vpop.permute.xlu0 %1661
        %1663 = vrot.lane.b32.xlu0 %v1313, 90
        %v1664 = vpop.permute.xlu0 %1663
        %1665 = vrot.lane.b32.xlu0 %v1336, 90
        %v1666 = vpop.permute.xlu0 %1665
        %1667 = vrot.lane.b32.xlu0 %v1333, 90
        %v1668 = vpop.permute.xlu0 %1667
        %1669 = vrot.lane.b32.xlu0 %v1315, 90
        %v1670 = vpop.permute.xlu0 %1669
        %1671 = vrot.lane.b32.xlu0 %v1337, 90
        %v1672 = vpop.permute.xlu0 %1671
        %1673 = vrot.lane.b32.xlu0 %v1334, 90
        %v1674 = vpop.permute.xlu0 %1673
        %1675 = vrot.lane.b32.xlu0 %v1317, 90
        %v1676 = vpop.permute.xlu0 %1675
        %1677 = vrot.lane.b32.xlu0 %v1338, 90
        %v1678 = vpop.permute.xlu0 %1677
        %v1679 = vsel %vm866, %v1656, %v1658
        %v1680 = vsel %vm866, %v1658, %v1660
        %v1681 = vsel %vm866, %v1662, %v1664
        %v1682 = vsel %vm866, %v1664, %v1666
        %v1683 = vsel %vm866, %v1668, %v1670
        %v1684 = vsel %vm866, %v1670, %v1672
        %v1685 = vsel %vm866, %v1674, %v1676
        %v1686 = vsel %vm866, %v1676, %v1678
        %v1699 = vld [vmem:[#allocation7] sm:$0xff]
        %v1700 = vld [vmem:[#allocation7 + $0x8] sm:$0xff]
        %v1701 = vld [vmem:[#allocation7 + $0x10] sm:$0xff]
        %v1702 = vld [vmem:[#allocation7 + $0x18] sm:$0xff]
        %v1703 = vld [vmem:[#allocation7 + $0x20] sm:$0xff]
        %v1704 = vld [vmem:[#allocation7 + $0x28] sm:$0xff]
        %v1705 = vld [vmem:[#allocation7 + $0x30] sm:$0xff]
        %v1706 = vld [vmem:[#allocation7 + $0x38] sm:$0xff]
        %v1707 = vld [vmem:[#allocation7 + $0x40] sm:$0xff]
        %v1708 = vld [vmem:[#allocation7 + $0x48] sm:$0xff]
        %v1709 = vld [vmem:[#allocation7 + $0x50] sm:$0xff]
        %v1710 = vld [vmem:[#allocation7 + $0x58] sm:$0xff]
        %v1712 = vsel %vm899, %v1701, 0
        %v1715 = vsel %vm899, %v1704, 0
        %v1718 = vsel %vm899, %v1707, 0
        %v1721 = vsel %vm899, %v1710, 0
        %1723 = vmatpush.msra.mxu0 %v1465
        %1724 = vmatpush.msra.mxu0 %v1463
        %1725 = vmatpush.msra.mxu0 %v1461
        %1726 = vmatpush.msra.mxu0 %v1459
        %1727 = vmatpush.msra.mxu0 %v1421
        %1728 = vmatpush.msra.mxu0 %v1419
        %1729 = vmatpush.msra.mxu0 %v1417
        %1730 = vmatpush.msra.mxu0 %v1415
        %1731 = vmatpush.msra.mxu0 %v1377
        %1732 = vmatpush.msra.mxu0 %v1375
        %1733 = vmatpush.msra.mxu0 %v1373
        %1734 = vmatpush.msra.mxu0 %v1371
        %1735 = vmatpush.msra.mxu0 %v1334
        %1736 = vmatpush.msra.mxu0 %v1333
        %1737 = vmatpush.msra.mxu0 %v1332
        %1738 = vmatpush.msra.mxu0 %v1331
        %1739 = vmatmul.f32.gmra.mxu0 %v1699
        %v1740 = vpop.f32.mrf.mxu0
        %v1741 = vadd.f32 0.0, %v1740
        %1742 = vmatmul.f32.gmra.mxu0 %v1702
        %v1743 = vpop.f32.mrf.mxu0
        %v1744 = vadd.f32 0.0, %v1743
        %1745 = vmatmul.f32.gmra.mxu0 %v1705
        %v1746 = vpop.f32.mrf.mxu0
        %v1747 = vadd.f32 0.0, %v1746
        %1748 = vmatmul.f32.gmra.mxu0 %v1708
        %v1749 = vpop.f32.mrf.mxu0
        %v1750 = vadd.f32 0.0, %v1749
        %1751 = vdwg.mxu0
        %1752 = vmatpush.msra.mxu0 %v1641
        %1753 = vmatpush.msra.mxu0 %v1639
        %1754 = vmatpush.msra.mxu0 %v1637
        %1755 = vmatpush.msra.mxu0 %v1635
        %1756 = vmatpush.msra.mxu0 %v1597
        %1757 = vmatpush.msra.mxu0 %v1595
        %1758 = vmatpush.msra.mxu0 %v1593
        %1759 = vmatpush.msra.mxu0 %v1591
        %1760 = vmatpush.msra.mxu0 %v1553
        %1761 = vmatpush.msra.mxu0 %v1551
        %1762 = vmatpush.msra.mxu0 %v1549
        %1763 = vmatpush.msra.mxu0 %v1547
        %1764 = vmatpush.msra.mxu0 %v1509
        %1765 = vmatpush.msra.mxu0 %v1507
        %1766 = vmatpush.msra.mxu0 %v1505
        %1767 = vmatpush.msra.mxu0 %v1503
        %1768 = vmatmul.f32.gmra.mxu0 %v1700
        %v1769 = vpop.f32.mrf.mxu0
        %v1770 = vadd.f32 %v1741, %v1769
        %1771 = vmatmul.f32.gmra.mxu0 %v1703
        %v1772 = vpop.f32.mrf.mxu0
        %v1773 = vadd.f32 %v1744, %v1772
        %1774 = vmatmul.f32.gmra.mxu0 %v1706
        %v1775 = vpop.f32.mrf.mxu0
        %v1776 = vadd.f32 %v1747, %v1775
        %1777 = vmatmul.f32.gmra.mxu0 %v1709
        %v1778 = vpop.f32.mrf.mxu0
        %v1779 = vadd.f32 %v1750, %v1778
        %1780 = vdwg.mxu0
        %1781 = vmatpush.msra.mxu0 0.0
        %1782 = vmatpush.msra.mxu0 0.0
        %1783 = vmatpush.msra.mxu0 0.0
        %1784 = vmatpush.msra.mxu0 0.0
        %1785 = vmatpush.msra.mxu0 0.0
        %1786 = vmatpush.msra.mxu0 0.0
        %1787 = vmatpush.msra.mxu0 0.0
        %1788 = vmatpush.msra.mxu0 0.0
        %1789 = vmatpush.msra.mxu0 0.0
        %1790 = vmatpush.msra.mxu0 0.0
        %1791 = vmatpush.msra.mxu0 0.0
        %1792 = vmatpush.msra.mxu0 0.0
        %1793 = vmatpush.msra.mxu0 %v1685
        %1794 = vmatpush.msra.mxu0 %v1683
        %1795 = vmatpush.msra.mxu0 %v1681
        %1796 = vmatpush.msra.mxu0 %v1679
        %1797 = vmatmul.f32.gmra.mxu0 %v1712
        %v1798 = vpop.f32.mrf.mxu0
        %v1799 = vadd.f32 %v1770, %v1798
        %1800 = vmatmul.f32.gmra.mxu0 %v1715
        %v1801 = vpop.f32.mrf.mxu0
        %v1802 = vadd.f32 %v1773, %v1801
        %1803 = vmatmul.f32.gmra.mxu0 %v1718
        %v1804 = vpop.f32.mrf.mxu0
        %v1805 = vadd.f32 %v1776, %v1804
        %1806 = vmatmul.f32.gmra.mxu0 %v1721
        %v1807 = vpop.f32.mrf.mxu0
        %v1808 = vadd.f32 %v1779, %v1807
        %1809 = vdwg.mxu0
        %1810 = vmatpush.msra.mxu0 %v1466
        %1811 = vmatpush.msra.mxu0 %v1464
        %1812 = vmatpush.msra.mxu0 %v1462
        %1813 = vmatpush.msra.mxu0 %v1460
        %1814 = vmatpush.msra.mxu0 %v1422
        %1815 = vmatpush.msra.mxu0 %v1420
        %1816 = vmatpush.msra.mxu0 %v1418
        %1817 = vmatpush.msra.mxu0 %v1416
        %1818 = vmatpush.msra.mxu0 %v1378
        %1819 = vmatpush.msra.mxu0 %v1376
        %1820 = vmatpush.msra.mxu0 %v1374
        %1821 = vmatpush.msra.mxu0 %v1372
        %1822 = vmatpush.msra.mxu0 %v1317
        %1823 = vmatpush.msra.mxu0 %v1315
        %1824 = vmatpush.msra.mxu0 %v1313
        %1825 = vmatpush.msra.mxu0 %v1311
        %1826 = vmatmul.f32.gmra.mxu0 %v1699
        %v1827 = vpop.f32.mrf.mxu0
        %v1828 = vadd.f32 0.0, %v1827
        %1829 = vmatmul.f32.gmra.mxu0 %v1702
        %v1830 = vpop.f32.mrf.mxu0
        %v1831 = vadd.f32 0.0, %v1830
        %1832 = vmatmul.f32.gmra.mxu0 %v1705
        %v1833 = vpop.f32.mrf.mxu0
        %v1834 = vadd.f32 0.0, %v1833
        %1835 = vmatmul.f32.gmra.mxu0 %v1708
        %v1836 = vpop.f32.mrf.mxu0
        %v1837 = vadd.f32 0.0, %v1836
        %1838 = vdwg.mxu0
        %1839 = vmatpush.msra.mxu0 %v1642
        %1840 = vmatpush.msra.mxu0 %v1640
        %1841 = vmatpush.msra.mxu0 %v1638
        %1842 = vmatpush.msra.mxu0 %v1636
        %1843 = vmatpush.msra.mxu0 %v1598
        %1844 = vmatpush.msra.mxu0 %v1596
        %1845 = vmatpush.msra.mxu0 %v1594
        %1846 = vmatpush.msra.mxu0 %v1592
        %1847 = vmatpush.msra.mxu0 %v1554
        %1848 = vmatpush.msra.mxu0 %v1552
        %1849 = vmatpush.msra.mxu0 %v1550
        %1850 = vmatpush.msra.mxu0 %v1548
        %1851 = vmatpush.msra.mxu0 %v1510
        %1852 = vmatpush.msra.mxu0 %v1508
        %1853 = vmatpush.msra.mxu0 %v1506
        %1854 = vmatpush.msra.mxu0 %v1504
        %1855 = vmatmul.f32.gmra.mxu0 %v1700
        %v1856 = vpop.f32.mrf.mxu0
        %v1857 = vadd.f32 %v1828, %v1856
        %1858 = vmatmul.f32.gmra.mxu0 %v1703
        %v1859 = vpop.f32.mrf.mxu0
        %v1860 = vadd.f32 %v1831, %v1859
        %1861 = vmatmul.f32.gmra.mxu0 %v1706
        %v1862 = vpop.f32.mrf.mxu0
        %v1863 = vadd.f32 %v1834, %v1862
        %1864 = vmatmul.f32.gmra.mxu0 %v1709
        %v1865 = vpop.f32.mrf.mxu0
        %v1866 = vadd.f32 %v1837, %v1865
        %1867 = vdwg.mxu0
        %1868 = vmatpush.msra.mxu0 0.0
        %1869 = vmatpush.msra.mxu0 0.0
        %1870 = vmatpush.msra.mxu0 0.0
        %1871 = vmatpush.msra.mxu0 0.0
        %1872 = vmatpush.msra.mxu0 0.0
        %1873 = vmatpush.msra.mxu0 0.0
        %1874 = vmatpush.msra.mxu0 0.0
        %1875 = vmatpush.msra.mxu0 0.0
        %1876 = vmatpush.msra.mxu0 0.0
        %1877 = vmatpush.msra.mxu0 0.0
        %1878 = vmatpush.msra.mxu0 0.0
        %1879 = vmatpush.msra.mxu0 0.0
        %1880 = vmatpush.msra.mxu0 %v1686
        %1881 = vmatpush.msra.mxu0 %v1684
        %1882 = vmatpush.msra.mxu0 %v1682
        %1883 = vmatpush.msra.mxu0 %v1680
        %1884 = vmatmul.f32.gmra.mxu0 %v1712
        %v1885 = vpop.f32.mrf.mxu0
        %v1886 = vadd.f32 %v1857, %v1885
        %1887 = vmatmul.f32.gmra.mxu0 %v1715
        %v1888 = vpop.f32.mrf.mxu0
        %v1889 = vadd.f32 %v1860, %v1888
        %1890 = vmatmul.f32.gmra.mxu0 %v1718
        %v1891 = vpop.f32.mrf.mxu0
        %v1892 = vadd.f32 %v1863, %v1891
        %1893 = vmatmul.f32.gmra.mxu0 %v1721
        %v1894 = vpop.f32.mrf.mxu0
        %v1895 = vadd.f32 %v1866, %v1894
        %1896 = vdwg.mxu0
        %1897 = vmatpush.msra.mxu0 %v1458
        %1898 = vmatpush.msra.mxu0 %v1452
        %1899 = vmatpush.msra.mxu0 %v1446
        %1900 = vmatpush.msra.mxu0 %v1440
        %1901 = vmatpush.msra.mxu0 %v1414
        %1902 = vmatpush.msra.mxu0 %v1408
        %1903 = vmatpush.msra.mxu0 %v1402
        %1904 = vmatpush.msra.mxu0 %v1396
        %1905 = vmatpush.msra.mxu0 %v1370
        %1906 = vmatpush.msra.mxu0 %v1364
        %1907 = vmatpush.msra.mxu0 %v1358
        %1908 = vmatpush.msra.mxu0 %v1352
        %1909 = vmatpush.msra.mxu0 %v1338
        %1910 = vmatpush.msra.mxu0 %v1337
        %1911 = vmatpush.msra.mxu0 %v1336
        %1912 = vmatpush.msra.mxu0 %v1335
        %1913 = vmatmul.f32.gmra.mxu0 %v1699
        %v1914 = vpop.f32.mrf.mxu0
        %v1915 = vadd.f32 0.0, %v1914
        %1916 = vmatmul.f32.gmra.mxu0 %v1702
        %v1917 = vpop.f32.mrf.mxu0
        %v1918 = vadd.f32 0.0, %v1917
        %1919 = vmatmul.f32.gmra.mxu0 %v1705
        %v1920 = vpop.f32.mrf.mxu0
        %v1921 = vadd.f32 0.0, %v1920
        %1922 = vmatmul.f32.gmra.mxu0 %v1708
        %v1923 = vpop.f32.mrf.mxu0
        %v1924 = vadd.f32 0.0, %v1923
        %1925 = vdwg.mxu0
        %1926 = vmatpush.msra.mxu0 %v1634
        %1927 = vmatpush.msra.mxu0 %v1628
        %1928 = vmatpush.msra.mxu0 %v1622
        %1929 = vmatpush.msra.mxu0 %v1616
        %1930 = vmatpush.msra.mxu0 %v1590
        %1931 = vmatpush.msra.mxu0 %v1584
        %1932 = vmatpush.msra.mxu0 %v1578
        %1933 = vmatpush.msra.mxu0 %v1572
        %1934 = vmatpush.msra.mxu0 %v1546
        %1935 = vmatpush.msra.mxu0 %v1540
        %1936 = vmatpush.msra.mxu0 %v1534
        %1937 = vmatpush.msra.mxu0 %v1528
        %1938 = vmatpush.msra.mxu0 %v1502
        %1939 = vmatpush.msra.mxu0 %v1496
        %1940 = vmatpush.msra.mxu0 %v1490
        %1941 = vmatpush.msra.mxu0 %v1484
        %1942 = vmatmul.f32.gmra.mxu0 %v1700
        %v1943 = vpop.f32.mrf.mxu0
        %v1944 = vadd.f32 %v1915, %v1943
        %1945 = vmatmul.f32.gmra.mxu0 %v1703
        %v1946 = vpop.f32.mrf.mxu0
        %v1947 = vadd.f32 %v1918, %v1946
        %1948 = vmatmul.f32.gmra.mxu0 %v1706
        %v1949 = vpop.f32.mrf.mxu0
        %v1950 = vadd.f32 %v1921, %v1949
        %1951 = vmatmul.f32.gmra.mxu0 %v1709
        %v1952 = vpop.f32.mrf.mxu0
        %v1953 = vadd.f32 %v1924, %v1952
        %1954 = vdwg.mxu0
        %1955 = vmatpush.msra.mxu0 0.0
        %1956 = vmatpush.msra.mxu0 0.0
        %1957 = vmatpush.msra.mxu0 0.0
        %1958 = vmatpush.msra.mxu0 0.0
        %1959 = vmatpush.msra.mxu0 0.0
        %1960 = vmatpush.msra.mxu0 0.0
        %1961 = vmatpush.msra.mxu0 0.0
        %1962 = vmatpush.msra.mxu0 0.0
        %1963 = vmatpush.msra.mxu0 0.0
        %1964 = vmatpush.msra.mxu0 0.0
        %1965 = vmatpush.msra.mxu0 0.0
        %1966 = vmatpush.msra.mxu0 0.0
        %1967 = vmatpush.msra.mxu0 %v1678
        %1968 = vmatpush.msra.mxu0 %v1672
        %1969 = vmatpush.msra.mxu0 %v1666
        %1970 = vmatpush.msra.mxu0 %v1660
        %1971 = vmatmul.f32.gmra.mxu0 %v1712
        %v1972 = vpop.f32.mrf.mxu0
        %v1973 = vadd.f32 %v1944, %v1972
        %1974 = vmatmul.f32.gmra.mxu0 %v1715
        %v1975 = vpop.f32.mrf.mxu0
        %v1976 = vadd.f32 %v1947, %v1975
        %1977 = vmatmul.f32.gmra.mxu0 %v1718
        %v1978 = vpop.f32.mrf.mxu0
        %v1979 = vadd.f32 %v1950, %v1978
        %1980 = vmatmul.f32.gmra.mxu0 %v1721
        %v1981 = vpop.f32.mrf.mxu0
        %v1982 = vadd.f32 %v1953, %v1981
        %1983 = vdwg.mxu0
        %v1984 = vld [vmem:[%s5] sm:$0xff]
        %v1985 = vld [vmem:[%s5 + $0x8] sm:$0xff]
        %v1986 = vld [vmem:[%s5 + $0x10] sm:$0xff]
        %v1987 = vld [vmem:[%s5 + $0x18] sm:$0xff]
        %1989 = vset.pattern.permute.xlu0 0
        %1990 = vperm.xlu0 %1989, %v1984
        %v1991 = vpop.permute.xlu0 %1990
        %1994 = vset.pattern.permute.xlu0 0
        %1995 = vperm.xlu0 %1994, %v1985
        %v1996 = vpop.permute.xlu0 %1995
        %1999 = vset.pattern.permute.xlu0 0
        %2000 = vperm.xlu0 %1999, %v1986
        %v2001 = vpop.permute.xlu0 %2000
        %2004 = vset.pattern.permute.xlu0 0
        %2005 = vperm.xlu0 %2004, %v1987
        %v2006 = vpop.permute.xlu0 %2005
        %v2008 = vmul.f32 %v1799, %v1991
        %v2009 = vmul.f32 %v1886, %v1991
        %v2010 = vmul.f32 %v1973, %v1991
        %v2011 = vmul.f32 %v1802, %v1996
        %v2012 = vmul.f32 %v1889, %v1996
        %v2013 = vmul.f32 %v1976, %v1996
        %v2014 = vmul.f32 %v1805, %v2001
        %v2015 = vmul.f32 %v1892, %v2001
        %v2016 = vmul.f32 %v1979, %v2001
        %v2017 = vmul.f32 %v1808, %v2006
        %v2018 = vmul.f32 %v1895, %v2006
        %v2019 = vmul.f32 %v1982, %v2006
        %v2020 = vld [vmem:[%s6] sm:$0xff]
        %v2021 = vld [vmem:[%s6 + $0x8] sm:$0xff]
        %v2022 = vld [vmem:[%s6 + $0x10] sm:$0xff]
        %v2023 = vld [vmem:[%s6 + $0x18] sm:$0xff]
        %2025 = vset.pattern.permute.xlu0 0
        %2026 = vperm.xlu0 %2025, %v2020
        %v2027 = vpop.permute.xlu0 %2026
        %2030 = vset.pattern.permute.xlu0 0
        %2031 = vperm.xlu0 %2030, %v2021
        %v2032 = vpop.permute.xlu0 %2031
        %2035 = vset.pattern.permute.xlu0 0
        %2036 = vperm.xlu0 %2035, %v2022
        %v2037 = vpop.permute.xlu0 %2036
        %2040 = vset.pattern.permute.xlu0 0
        %2041 = vperm.xlu0 %2040, %v2023
        %v2042 = vpop.permute.xlu0 %2041
        %v2044 = vadd.f32 %v2008, %v2027
        %v2045 = vadd.f32 %v2009, %v2027
        %v2046 = vadd.f32 %v2010, %v2027
        %v2047 = vadd.f32 %v2011, %v2032
        %v2048 = vadd.f32 %v2012, %v2032
        %v2049 = vadd.f32 %v2013, %v2032
        %v2050 = vadd.f32 %v2014, %v2037
        %v2051 = vadd.f32 %v2015, %v2037
        %v2052 = vadd.f32 %v2016, %v2037
        %v2053 = vadd.f32 %v2017, %v2042
        %v2054 = vadd.f32 %v2018, %v2042
        %v2055 = vadd.f32 %v2019, %v2042
        %v2056 = vmax.f32 %v2044, 0.0
        %v2057 = vmax.f32 %v2045, 0.0
        %v2058 = vmax.f32 %v2046, 0.0
        %v2059 = vmax.f32 %v2047, 0.0
        %v2060 = vmax.f32 %v2048, 0.0
        %v2061 = vmax.f32 %v2049, 0.0
        %v2062 = vmax.f32 %v2050, 0.0
        %v2063 = vmax.f32 %v2051, 0.0
        %v2064 = vmax.f32 %v2052, 0.0
        %v2065 = vmax.f32 %v2053, 0.0
        %v2066 = vmax.f32 %v2054, 0.0
        %v2067 = vmax.f32 %v2055, 0.0
        %v2068 = vadd.f32 %v2056, %v332
        %v2069 = vadd.f32 %v2057, %v333
        %v2070 = vadd.f32 %v2058, %v334
        %v2071 = vadd.f32 %v2059, %v335
        %v2072 = vadd.f32 %v2060, %v336
        %v2073 = vadd.f32 %v2061, %v337
        %v2074 = vadd.f32 %v2062, %v338
        %v2075 = vadd.f32 %v2063, %v339
        %v2076 = vadd.f32 %v2064, %v340
        %v2077 = vadd.f32 %v2065, %v341
        %v2078 = vadd.f32 %v2066, %v342
        %v2079 = vadd.f32 %v2067, %v343
        %v2080 = vmax.f32 %v2068, 0.0
        %v2081 = vmax.f32 %v2069, 0.0
        %v2082 = vmax.f32 %v2070, 0.0
        %v2083 = vmax.f32 %v2071, 0.0
        %v2084 = vmax.f32 %v2072, 0.0
        %v2085 = vmax.f32 %v2073, 0.0
        %v2086 = vmax.f32 %v2074, 0.0
        %v2087 = vmax.f32 %v2075, 0.0
        %v2088 = vmax.f32 %v2076, 0.0
        %v2089 = vmax.f32 %v2077, 0.0
        %v2090 = vmax.f32 %v2078, 0.0
        %v2091 = vmax.f32 %v2079, 0.0
        %v2092 = vsel %vm1260, %v2080, 0.0
        %v2093 = vsel %vm1261, %v2081, 0.0
        %v2094 = vsel %vm1262, %v2082, 0.0
        %v2095 = vsel %vm1260, %v2083, 0.0
        %v2096 = vsel %vm1261, %v2084, 0.0
        %v2097 = vsel %vm1262, %v2085, 0.0
        %v2098 = vsel %vm1260, %v2086, 0.0
        %v2099 = vsel %vm1261, %v2087, 0.0
        %v2100 = vsel %vm1262, %v2088, 0.0
        %v2101 = vsel %vm1260, %v2089, 0.0
        %v2102 = vsel %vm1261, %v2090, 0.0
        %v2103 = vsel %vm1262, %v2091, 0.0
        %2104 = vst [vmem:[%s331] sm:$0xff] %v2092
        %2105 = vst [vmem:[%s331 + $0x8] sm:$0xff] %v2093
        %2106 = vst.msk [vmem:[%s331 + $0x10] sm:$0xff] %vm899, %v2094
        %2107 = vst [vmem:[%s331 + $0x18] sm:$0xff] %v2095
        %2108 = vst [vmem:[%s331 + $0x20] sm:$0xff] %v2096
        %2109 = vst.msk [vmem:[%s331 + $0x28] sm:$0xff] %vm899, %v2097
        %2110 = vst [vmem:[%s331 + $0x30] sm:$0xff] %v2098
        %2111 = vst [vmem:[%s331 + $0x38] sm:$0xff] %v2099
        %2112 = vst.msk [vmem:[%s331 + $0x40] sm:$0xff] %vm899, %v2100
        %2113 = vst [vmem:[%s331 + $0x48] sm:$0xff] %v2101
        %2114 = vst [vmem:[%s331 + $0x50] sm:$0xff] %v2102
        %2115 = vst.msk [vmem:[%s331 + $0x58] sm:$0xff] %vm899, %v2103
        %s2116 = sand.u32 %s185, 1
        %s2117 = scalar_lea.sflag [#allocation4], %s2116
        %s2118 = sand.u32 %s185, 1
        %s2119 = smul.addr %s2118, 96
        %s2120 = scalar_lea.vmem [#allocation8], %s2119
        // Predicated region
        $region61: #{tpu_custom_call.1} parent=47 // pred_check
          %p2121 = pneg %p195
        $region62: #{tpu_custom_call.1} parent=47 // pred_check_branch
          %2123 = sbr.rel (%p2121) target = $region64
        $region63: #{tpu_custom_call.1} parent=47 // pred_region
          %2125 = vsyncadd %s2117, 0
          %s2126 = smul.addr %s25, 12
          %s2127 = smul.addr %s2126, 8
          %s2128 = scalar_lea.hbm %s7, %s2127
          %s2129 = sshll.u32 %s2120, 4
          %s2130 = int_to_ptr.vmem [resolvable:$true] %s2129
          %s2131 = sshll.u32 %s2128, 4
          %s2132 = int_to_ptr.hbm [resolvable:$true] %s2131
          %2137 = dma.vmem_to_hbm [thread:$0]  %s2130, 1536, %s2132, %s2117, 384, 384, 24
        $region64: #{tpu_custom_call.1} parent=47 // pred_fallthru
          _
      $region48: #{tpu_custom_call.1} parent=5 // pred_fallthru
        _
      %p2138 = scmp.le.s32.totalorder 2, %s20
      // Predicated region
      $region65: #{tpu_custom_call.1} parent=5 // pred_check
        %p2139 = pneg %p2138
      $region66: #{tpu_custom_call.1} parent=5 // pred_check_branch
        %2141 = sbr.rel (%p2139) target = $region68
      $region67: #{tpu_custom_call.1} parent=5 // pred_region
        %s2142 = ssub.s32 %s20, 2
        // Predicated region
        $region69: #{tpu_custom_call.1} parent=67 // pred_check
          %p2143 = pneg %p201
        $region70: #{tpu_custom_call.1} parent=67 // pred_check_branch
          %2145 = sbr.rel (%p2143) target = $region72
        $region71: #{tpu_custom_call.1} parent=67 // pred_region
          %s2146 = sand.u32 %s186, 1
          %s2147 = scalar_lea.sflag [#allocation4], %s2146
          %s2148 = sand.u32 %s186, 1
          %s2149 = smul.addr %s2148, 96
          %s2150 = scalar_lea.vmem [#allocation8], %s2149
          %2152 = dma.done %s2147, 1536
        $region72: #{tpu_custom_call.1} parent=67 // pred_fallthru
          _
      $region68: #{tpu_custom_call.1} parent=5 // pred_fallthru
        _
    $region6: #{tpu_custom_call.1} parent=1 // loop_footer
      %s24 = sadd.s32 1, %s20
    $region7: #{tpu_custom_call.1} parent=1 // loop_footer_branch
      %19 = sbr.rel target = $region3
    $region8: #{tpu_custom_call.1} parent=1 // loop_exit
      _
    %2153 = vsyncpa [#allocation3], 1
    %s2154 = scalar_lea.sflag [#allocation3], 1
    %2155 = vsyncpa %s2154, 1
    %2156 = vsyncpa [#allocation6], 1
    %2157 = vsyncpa [#allocation4], 1
    %s2158 = scalar_lea.sflag [#allocation4], 1
    %2159 = vsyncpa %s2158, 1

</llo_original>
